<compile_context>
chip_gen: v6e
topology: v6e:2x2x1
jax: 0.10.0
libtpu: 0.0.40
codegen_flags: <defaults>
</compile_context>

<pallas_src>
import functools

import numpy as np
import jax
import jax.numpy as jnp
from jax.experimental import pallas as pl
from jax.experimental.pallas import tpu as pltpu


# --------------------------------------------------------------------------- #
# Kernel
# --------------------------------------------------------------------------- #
def _mbconv_kernel(x_ref, wexp_ref, b1_ref, wdw_ref, shift_ref, b2_ref,
                   wsr_ref, bsr_ref, wse_ref, bse_ref, wpr_ref, b3_ref,
                   out_ref, *, coup, K):
    """One image per grid step.  All activations live as (H, W*C) lane-dense slabs."""
    L = wexp_ref.shape[1]          # W * coup
    P = (K - 1) // 2

    def swish(v):                  # MemoryEfficientSwish forward: x * sigmoid(x)
        return v * jax.nn.sigmoid(v)

    x2d = x_ref[0]                                            # (H, W*Cin), lane-dense

    # ---- expand: 1x1 conv (BN scale pre-folded into weight) + bias + swish ----
    y = jnp.dot(x2d, wexp_ref[...], preferred_element_type=jnp.float32)   # (H, L)
    y = swish(y + b1_ref[...])

    # ---- depthwise KxK conv, stride 1, SAME padding (BN scale folded) ---------
    # dx shifts: lane rolls by whole pixels (coup lanes); wrap-around contributions
    # are killed by the zeroed boundary weights baked into wdw_ref on the host.
    y_sh = []
    for d in range(K):
        s = ((P - d) * coup) % L                              # out[l] = y[l + (d-P)*coup]
        y_sh.append(y if s == 0 else pltpu.roll(y, shift=s, axis=1))

    # dy shifts: (H, H) 0/1 shift matrices on the MXU (zero rows = SAME padding).
    acc = jnp.zeros_like(y)
    for dy in range(K):
        t = y_sh[0] * wdw_ref[dy * K + 0]                     # (H, L) * (1, L)
        for d in range(1, K):
            t = t + y_sh[d] * wdw_ref[dy * K + d]
        acc = acc + jnp.dot(shift_ref[dy], t, preferred_element_type=jnp.float32)
    y = swish(acc + b2_ref[...])

    # ---- squeeze-and-excite (global avg pool folded into the reduce weight) ---
    colsum = jnp.sum(y, axis=0, keepdims=True)                # (1, L)
    r = jnp.dot(colsum, wsr_ref[...], preferred_element_type=jnp.float32)  # (1, csq)
    r = swish(r + bsr_ref[...])
    e = jnp.dot(r, wse_ref[...], preferred_element_type=jnp.float32)       # (1, L)
    e = e + bse_ref[...]
    y = y * jax.nn.sigmoid(e)                                 # broadcast over rows

    # ---- project: 1x1 conv (BN scale folded) + bias + identity skip -----------
    z = jnp.dot(y, wpr_ref[...], preferred_element_type=jnp.float32)       # (H, W*Cout)
    z = z + b3_ref[...]
    z = z + x2d                                               # id_skip, stride=1, Cin==Cout
    out_ref[0] = z.astype(out_ref.dtype)


# --------------------------------------------------------------------------- #
# Host-side weight preparation (BN folding, tiling, block-diagonalisation)
# --------------------------------------------------------------------------- #
def _prepare_params(p, H, W):
    w_exp = p["w_exp"]                          # (cin, coup)
    cin, coup = w_exp.shape
    w_proj = p["w_proj"]                        # (coup, cout)
    cout = w_proj.shape[1]
    K = p["w_dw"].shape[0]
    P = (K - 1) // 2
    csq = p["w_sr"].shape[1]
    L = W * coup

    def block_diag(w):                          # (a, b) -> (W*a, W*b) block-diagonal
        a, b = w.shape
        eye = jnp.eye(W, dtype=w.dtype)
        return jnp.einsum("wv,ab->wavb", eye, w).reshape(W * a, W * b)

    def tile_row(v):                            # (1, c) -> (1, W*c)
        return jnp.tile(v.reshape(1, -1), (1, W))

    # BN scales folded into the conv weights (only bias adds remain in-kernel).
    wexp_big = block_diag(w_exp * p["s1"].reshape(1, coup))        # (W*cin,  W*coup)
    wproj_big = block_diag(w_proj * p["s3"].reshape(1, cout))      # (W*coup, W*cout)

    # Depthwise weights: fold BN scale + SAME-padding boundary mask, tile over pixels.
    wdw = p["w_dw"] * p["s2"].reshape(1, 1, coup)                  # (K, K, coup)
    wdw_tiled = jnp.broadcast_to(wdw[:, :, None, :], (K, K, W, coup))
    col = jnp.arange(W)
    taps = []
    for dy in range(K):
        for dx in range(K):
            valid = ((col + dx - P >= 0) & (col + dx - P < W)).astype(wdw.dtype)
            taps.append(wdw_tiled[dy, dx] * valid[:, None])        # (W, coup)
    wdw_packed = jnp.stack(taps, axis=0).reshape(K * K, 1, L)      # (K*K, 1, W*coup)

    # dy shift matrices (SAME-padding rows are zero rows) -> tiny MXU matmuls in-kernel.
    row = np.arange(H)
    mats = np.zeros((K, H, H), np.float32)
    for dy in range(K):
        src = row + dy - P
        ok = (src >= 0) & (src < H)
        mats[dy, row[ok], src[ok]] = 1.0
    shift_mats = jnp.asarray(mats)

    # SE: fold 1/(H*W) average pool into the reduce weight; tile both over pixels.
    wsr_big = jnp.broadcast_to((p["w_sr"] / float(H * W))[None, :, :],
                               (W, coup, csq)).reshape(L, csq)     # (W*coup, csq)
    wse_big = jnp.broadcast_to(p["w_se"][:, None, :],
                               (csq, W, coup)).reshape(csq, L)     # (csq, W*coup)

    return (wexp_big, tile_row(p["b1"]), wdw_packed, shift_mats, tile_row(p["b2"]),
            wsr_big, p["b_sr"].reshape(1, csq), wse_big, tile_row(p["b_se"]),
            wproj_big, tile_row(p["b3"]))


def _full_spec(a):
    zeros = (0,) * a.ndim
    return pl.BlockSpec(a.shape, lambda n, _z=zeros: _z)


# --------------------------------------------------------------------------- #
# Wrappers
# --------------------------------------------------------------------------- #
def mbconv_block_bw_nhwc(x_nhwc, p):
    """Forward pass of MBConvBlockBW on NHWC input (no layout transposes needed)."""
    N, H, W, cin = x_nhwc.shape
    coup = p["w_exp"].shape[1]
    cout = p["w_proj"].shape[1]
    K = p["w_dw"].shape[0]
    assert cin == cout, "id-skip path requires input_filters == output_filters"

    prepped = _prepare_params(p, H, W)
    x2 = x_nhwc.reshape(N, H, W * cin)                  # contiguous -> free, lane-dense

    kernel = functools.partial(_mbconv_kernel, coup=coup, K=K)
    in_specs = [pl.BlockSpec((1, H, W * cin), lambda n: (n, 0, 0))]
    in_specs += [_full_spec(a) for a in prepped]

    out2 = pl.pallas_call(
        kernel,
        out_shape=jax.ShapeDtypeStruct((N, H, W * cout), jnp.float32),
        grid=(N,),
        in_specs=in_specs,
        out_specs=pl.BlockSpec((1, H, W * cout), lambda n: (n, 0, 0)),
        compiler_params=pltpu.CompilerParams(dimension_semantics=("parallel",)),
    )(x2, *prepped)
    return out2.reshape(N, H, W, cout)


def mbconv_block_bw(x_nchw, p):
    """NCHW wrapper matching the PyTorch module's layout.

    Prefer mbconv_block_bw_nhwc in NHWC pipelines to avoid the two HBM transposes.
    """
    x_nhwc = jnp.transpose(x_nchw, (0, 2, 3, 1))
    out = mbconv_block_bw_nhwc(x_nhwc, p)
    return jnp.transpose(out, (0, 3, 1, 2))


# --------------------------------------------------------------------------- #
# Synthetic parameters + pure-JAX reference
# --------------------------------------------------------------------------- #
def init_params(key, cin, expand_ratio, k, se_ratio, cout, eps=1e-3):
    """Deterministic synthetic parameters; shapes follow the PyTorch module."""
    coup = cin * expand_ratio
    csq = max(1, int(cin * se_ratio))
    keys = jax.random.split(key, 10)

    def conv(kk, shape, scale=0.1):
        return scale * jax.random.normal(kk, shape, jnp.float32)

    # PyTorch Conv2d weight layout: (out, in/groups, kh, kw)
    w_exp_t = conv(keys[0], (coup, cin, 1, 1))
    w_dw_t = conv(keys[1], (coup, 1, k, k))
    w_sr_t = conv(keys[2], (csq, coup, 1, 1))
    b_sr = conv(keys[3], (csq,))
    w_se_t = conv(keys[4], (coup, csq, 1, 1))
    b_se = conv(keys[5], (coup,))
    w_pr_t = conv(keys[6], (cout, coup, 1, 1))

    def bn_fold(kk, c):
        k1, k2, k3, k4 = jax.random.split(kk, 4)
        gamma = 1.0 + 0.1 * jax.random.normal(k1, (c,), jnp.float32)
        beta = 0.1 * jax.random.normal(k2, (c,), jnp.float32)
        mean = 0.1 * jax.random.normal(k3, (c,), jnp.float32)
        var = 1.0 + 0.1 * jnp.abs(jax.random.normal(k4, (c,), jnp.float32))
        s = gamma / jnp.sqrt(var + eps)
        return s, beta - mean * s

    s1, b1 = bn_fold(keys[7], coup)
    s2, b2 = bn_fold(keys[8], coup)
    s3, b3 = bn_fold(keys[9], cout)

    return dict(
        w_exp=jnp.transpose(w_exp_t[:, :, 0, 0]),               # (cin, coup)
        w_dw=jnp.transpose(w_dw_t[:, 0, :, :], (1, 2, 0)),      # (k, k, coup)
        w_sr=jnp.transpose(w_sr_t[:, :, 0, 0]),                 # (coup, csq)
        b_sr=b_sr.reshape(1, csq),
        w_se=jnp.transpose(w_se_t[:, :, 0, 0]),                 # (csq, coup)
        b_se=b_se.reshape(1, coup),
        w_proj=jnp.transpose(w_pr_t[:, :, 0, 0]),               # (coup, cout)
        s1=s1.reshape(1, coup), b1=b1.reshape(1, coup),
        s2=s2.reshape(1, coup), b2=b2.reshape(1, coup),
        s3=s3.reshape(1, cout), b3=b3.reshape(1, cout),
    )


def ref_forward(x_nchw, p):
    """Pure-JAX reference with identical math (for verification)."""
    sig = jax.nn.sigmoid
    x = jnp.transpose(x_nchw, (0, 2, 3, 1))
    N, H, W, Cin = x.shape
    K = p["w_dw"].shape[0]
    P = (K - 1) // 2
    y = jnp.einsum("nhwc,cd->nhwd", x, p["w_exp"])
    y = y * p["s1"][0] + p["b1"][0]
    y = y * sig(y)
    yp = jnp.pad(y, ((0, 0), (P, P), (P, P), (0, 0)))
    acc = jnp.zeros_like(y)
    for dy in range(K):
        for dx in range(K):
            acc = acc + yp[:, dy:dy + H, dx:dx + W, :] * p["w_dw"][dy, dx]
    y = acc * p["s2"][0] + p["b2"][0]
    y = y * sig(y)
    sq = jnp.mean(y, axis=(1, 2))
    r = sq @ p["w_sr"] + p["b_sr"]
    r = r * sig(r)
    e = r @ p["w_se"] + p["b_se"]
    y = y * sig(e)[:, None, None, :]
    z = jnp.einsum("nhwc,cd->nhwd", y, p["w_proj"])
    z = z * p["s3"][0] + p["b3"][0]
    z = z + x
    return jnp.transpose(z, (0, 3, 1, 2))


if __name__ == "__main__":
    key = jax.random.PRNGKey(0)
    kx, kp = jax.random.split(key)

    N, Cin, H, W = 2, 8, 16, 16
    expand_ratio, ksize, se_ratio, Cout = 4, 3, 0.25, 8

    x = jax.random.normal(kx, (N, Cin, H, W), jnp.float32)
    params = init_params(kp, Cin, expand_ratio, ksize, se_ratio, Cout)

    out = jax.jit(mbconv_block_bw)(x, params)
    out = jax.block_until_ready(out)

    ref = ref_forward(x, params)
    assert out.shape == (N, Cout, H, W)
    np.testing.assert_allclose(np.asarray(out), np.asarray(ref), rtol=1e-3, atol=1e-3)

    print("KERNEL_OK")
</pallas_src>

<mosaic_0001>
module attributes {stable_mosaic.version = 11 : i64} {
  func.func @_mbconv_kernel(%arg0: i32, %arg1: memref<1x16x128xf32, #tpu.memory_space<vmem>>, %arg2: memref<128x512xf32, #tpu.memory_space<vmem>>, %arg3: memref<1x512xf32, #tpu.memory_space<vmem>>, %arg4: memref<9x1x512xf32, #tpu.memory_space<vmem>>, %arg5: memref<3x16x16xf32, #tpu.memory_space<vmem>>, %arg6: memref<1x512xf32, #tpu.memory_space<vmem>>, %arg7: memref<512x2xf32, #tpu.memory_space<vmem>>, %arg8: memref<1x2xf32, #tpu.memory_space<vmem>>, %arg9: memref<2x512xf32, #tpu.memory_space<vmem>>, %arg10: memref<1x512xf32, #tpu.memory_space<vmem>>, %arg11: memref<512x128xf32, #tpu.memory_space<vmem>>, %arg12: memref<1x128xf32, #tpu.memory_space<vmem>>, %arg13: memref<1x16x128xf32, #tpu.memory_space<vmem>>) attributes {dimension_semantics = [#tpu.dimension_semantics<parallel>], iteration_bounds = array<i64: 2>, scalar_prefetch = 0 : i64, scratch_operands = 0 : i64, tpu.core_type = #tpu.core_type<tc>, window_params = [{transform_indices = @transform_0, window_bounds = array<i64: 1, 16, 128>}, {pipeline_mode = #tpu.pipeline_mode<synchronous>, transform_indices = @transform_1, window_bounds = array<i64: 128, 512>}, {pipeline_mode = #tpu.pipeline_mode<synchronous>, transform_indices = @transform_2, window_bounds = array<i64: 1, 512>}, {pipeline_mode = #tpu.pipeline_mode<synchronous>, transform_indices = @transform_3, window_bounds = array<i64: 9, 1, 512>}, {pipeline_mode = #tpu.pipeline_mode<synchronous>, transform_indices = @transform_4, window_bounds = array<i64: 3, 16, 16>}, {pipeline_mode = #tpu.pipeline_mode<synchronous>, transform_indices = @transform_5, window_bounds = array<i64: 1, 512>}, {pipeline_mode = #tpu.pipeline_mode<synchronous>, transform_indices = @transform_6, window_bounds = array<i64: 512, 2>}, {pipeline_mode = #tpu.pipeline_mode<synchronous>, transform_indices = @transform_7, window_bounds = array<i64: 1, 2>}, {pipeline_mode = #tpu.pipeline_mode<synchronous>, transform_indices = @transform_8, window_bounds = array<i64: 2, 512>}, {pipeline_mode = #tpu.pipeline_mode<synchronous>, transform_indices = @transform_9, window_bounds = array<i64: 1, 512>}, {pipeline_mode = #tpu.pipeline_mode<synchronous>, transform_indices = @transform_10, window_bounds = array<i64: 512, 128>}, {pipeline_mode = #tpu.pipeline_mode<synchronous>, transform_indices = @transform_11, window_bounds = array<i64: 1, 128>}, {transform_indices = @transform_12, window_bounds = array<i64: 1, 16, 128>}]} {
    %c0 = arith.constant 0 : index
    %c0_0 = arith.constant 0 : index
    %c0_1 = arith.constant 0 : index
    %0 = vector.load %arg1[%c0, %c0_0, %c0_1] : memref<1x16x128xf32, #tpu.memory_space<vmem>>, vector<1x16x128xf32>
    %1 = vector.shape_cast %0 : vector<1x16x128xf32> to vector<16x128xf32>
    %c0_2 = arith.constant 0 : index
    %c0_3 = arith.constant 0 : index
    %2 = vector.load %arg2[%c0_2, %c0_3] : memref<128x512xf32, #tpu.memory_space<vmem>>, vector<128x512xf32>
    %cst = arith.constant dense<0.000000e+00> : vector<16x512xf32>
    %3 = tpu.matmul %1, %2, %cst {dimension_numbers = #tpu.dot_dimension_numbers<[1], [0], [0], [1], [0, 0, 1, 1], [], []>} : vector<16x128xf32>, vector<128x512xf32>, vector<16x512xf32> -> vector<16x512xf32>
    %c0_4 = arith.constant 0 : index
    %c0_5 = arith.constant 0 : index
    %4 = vector.load %arg3[%c0_4, %c0_5] : memref<1x512xf32, #tpu.memory_space<vmem>>, vector<1x512xf32>
    %5 = vector.broadcast %4 : vector<1x512xf32> to vector<16x512xf32>
    %6 = arith.addf %3, %5 : vector<16x512xf32>
    %7 = arith.negf %6 : vector<16x512xf32>
    %8 = math.exp %7 : vector<16x512xf32>
    %cst_6 = arith.constant 1.000000e+00 : f32
    %9 = vector.broadcast %cst_6 : f32 to vector<16x512xf32>
    %10 = arith.addf %9, %8 : vector<16x512xf32>
    %11 = arith.divf %9, %10 : vector<16x512xf32>
    %12 = arith.mulf %6, %11 : vector<16x512xf32>
    %c32_i32 = arith.constant 32 : i32
    %13 = tpu.dynamic_rotate %12 by %c32_i32 dim 1 : vector<16x512xf32>, i32 -> vector<16x512xf32>
    %c480_i32 = arith.constant 480 : i32
    %14 = tpu.dynamic_rotate %12 by %c480_i32 dim 1 : vector<16x512xf32>, i32 -> vector<16x512xf32>
    %cst_7 = arith.constant 0.000000e+00 : f32
    %15 = vector.broadcast %cst_7 : f32 to vector<16x512xf32>
    %c0_8 = arith.constant 0 : index
    %c0_9 = arith.constant 0 : index
    %c0_10 = arith.constant 0 : index
    %16 = vector.load %arg4[%c0_8, %c0_9, %c0_10] : memref<9x1x512xf32, #tpu.memory_space<vmem>>, vector<1x1x512xf32>
    %17 = vector.shape_cast %16 : vector<1x1x512xf32> to vector<1x512xf32>
    %18 = vector.broadcast %17 : vector<1x512xf32> to vector<16x512xf32>
    %19 = arith.mulf %13, %18 : vector<16x512xf32>
    %c1 = arith.constant 1 : index
    %c0_11 = arith.constant 0 : index
    %c0_12 = arith.constant 0 : index
    %20 = vector.load %arg4[%c1, %c0_11, %c0_12] : memref<9x1x512xf32, #tpu.memory_space<vmem>>, vector<1x1x512xf32>
    %21 = vector.shape_cast %20 : vector<1x1x512xf32> to vector<1x512xf32>
    %22 = vector.broadcast %21 : vector<1x512xf32> to vector<16x512xf32>
    %23 = arith.mulf %12, %22 : vector<16x512xf32>
    %24 = arith.addf %19, %23 : vector<16x512xf32>
    %c2 = arith.constant 2 : index
    %c0_13 = arith.constant 0 : index
    %c0_14 = arith.constant 0 : index
    %25 = vector.load %arg4[%c2, %c0_13, %c0_14] : memref<9x1x512xf32, #tpu.memory_space<vmem>>, vector<1x1x512xf32>
    %26 = vector.shape_cast %25 : vector<1x1x512xf32> to vector<1x512xf32>
    %27 = vector.broadcast %26 : vector<1x512xf32> to vector<16x512xf32>
    %28 = arith.mulf %14, %27 : vector<16x512xf32>
    %29 = arith.addf %24, %28 : vector<16x512xf32>
    %c0_15 = arith.constant 0 : index
    %c0_16 = arith.constant 0 : index
    %c0_17 = arith.constant 0 : index
    %30 = vector.load %arg5[%c0_15, %c0_16, %c0_17] : memref<3x16x16xf32, #tpu.memory_space<vmem>>, vector<1x16x16xf32>
    %31 = vector.shape_cast %30 : vector<1x16x16xf32> to vector<16x16xf32>
    %cst_18 = arith.constant dense<0.000000e+00> : vector<16x512xf32>
    %32 = tpu.matmul %31, %29, %cst_18 {dimension_numbers = #tpu.dot_dimension_numbers<[1], [0], [0], [1], [0, 0, 1, 1], [], []>} : vector<16x16xf32>, vector<16x512xf32>, vector<16x512xf32> -> vector<16x512xf32>
    %33 = arith.addf %15, %32 : vector<16x512xf32>
    %c3 = arith.constant 3 : index
    %c0_19 = arith.constant 0 : index
    %c0_20 = arith.constant 0 : index
    %34 = vector.load %arg4[%c3, %c0_19, %c0_20] : memref<9x1x512xf32, #tpu.memory_space<vmem>>, vector<1x1x512xf32>
    %35 = vector.shape_cast %34 : vector<1x1x512xf32> to vector<1x512xf32>
    %36 = vector.broadcast %35 : vector<1x512xf32> to vector<16x512xf32>
    %37 = arith.mulf %13, %36 : vector<16x512xf32>
    %c4 = arith.constant 4 : index
    %c0_21 = arith.constant 0 : index
    %c0_22 = arith.constant 0 : index
    %38 = vector.load %arg4[%c4, %c0_21, %c0_22] : memref<9x1x512xf32, #tpu.memory_space<vmem>>, vector<1x1x512xf32>
    %39 = vector.shape_cast %38 : vector<1x1x512xf32> to vector<1x512xf32>
    %40 = vector.broadcast %39 : vector<1x512xf32> to vector<16x512xf32>
    %41 = arith.mulf %12, %40 : vector<16x512xf32>
    %42 = arith.addf %37, %41 : vector<16x512xf32>
    %c5 = arith.constant 5 : index
    %c0_23 = arith.constant 0 : index
    %c0_24 = arith.constant 0 : index
    %43 = vector.load %arg4[%c5, %c0_23, %c0_24] : memref<9x1x512xf32, #tpu.memory_space<vmem>>, vector<1x1x512xf32>
    %44 = vector.shape_cast %43 : vector<1x1x512xf32> to vector<1x512xf32>
    %45 = vector.broadcast %44 : vector<1x512xf32> to vector<16x512xf32>
    %46 = arith.mulf %14, %45 : vector<16x512xf32>
    %47 = arith.addf %42, %46 : vector<16x512xf32>
    %c1_25 = arith.constant 1 : index
    %c0_26 = arith.constant 0 : index
    %c0_27 = arith.constant 0 : index
    %48 = vector.load %arg5[%c1_25, %c0_26, %c0_27] : memref<3x16x16xf32, #tpu.memory_space<vmem>>, vector<1x16x16xf32>
    %49 = vector.shape_cast %48 : vector<1x16x16xf32> to vector<16x16xf32>
    %cst_28 = arith.constant dense<0.000000e+00> : vector<16x512xf32>
    %50 = tpu.matmul %49, %47, %cst_28 {dimension_numbers = #tpu.dot_dimension_numbers<[1], [0], [0], [1], [0, 0, 1, 1], [], []>} : vector<16x16xf32>, vector<16x512xf32>, vector<16x512xf32> -> vector<16x512xf32>
    %51 = arith.addf %33, %50 : vector<16x512xf32>
    %c6 = arith.constant 6 : index
    %c0_29 = arith.constant 0 : index
    %c0_30 = arith.constant 0 : index
    %52 = vector.load %arg4[%c6, %c0_29, %c0_30] : memref<9x1x512xf32, #tpu.memory_space<vmem>>, vector<1x1x512xf32>
    %53 = vector.shape_cast %52 : vector<1x1x512xf32> to vector<1x512xf32>
    %54 = vector.broadcast %53 : vector<1x512xf32> to vector<16x512xf32>
    %55 = arith.mulf %13, %54 : vector<16x512xf32>
    %c7 = arith.constant 7 : index
    %c0_31 = arith.constant 0 : index
    %c0_32 = arith.constant 0 : index
    %56 = vector.load %arg4[%c7, %c0_31, %c0_32] : memref<9x1x512xf32, #tpu.memory_space<vmem>>, vector<1x1x512xf32>
    %57 = vector.shape_cast %56 : vector<1x1x512xf32> to vector<1x512xf32>
    %58 = vector.broadcast %57 : vector<1x512xf32> to vector<16x512xf32>
    %59 = arith.mulf %12, %58 : vector<16x512xf32>
    %60 = arith.addf %55, %59 : vector<16x512xf32>
    %c8 = arith.constant 8 : index
    %c0_33 = arith.constant 0 : index
    %c0_34 = arith.constant 0 : index
    %61 = vector.load %arg4[%c8, %c0_33, %c0_34] : memref<9x1x512xf32, #tpu.memory_space<vmem>>, vector<1x1x512xf32>
    %62 = vector.shape_cast %61 : vector<1x1x512xf32> to vector<1x512xf32>
    %63 = vector.broadcast %62 : vector<1x512xf32> to vector<16x512xf32>
    %64 = arith.mulf %14, %63 : vector<16x512xf32>
    %65 = arith.addf %60, %64 : vector<16x512xf32>
    %c2_35 = arith.constant 2 : index
    %c0_36 = arith.constant 0 : index
    %c0_37 = arith.constant 0 : index
    %66 = vector.load %arg5[%c2_35, %c0_36, %c0_37] : memref<3x16x16xf32, #tpu.memory_space<vmem>>, vector<1x16x16xf32>
    %67 = vector.shape_cast %66 : vector<1x16x16xf32> to vector<16x16xf32>
    %cst_38 = arith.constant dense<0.000000e+00> : vector<16x512xf32>
    %68 = tpu.matmul %67, %65, %cst_38 {dimension_numbers = #tpu.dot_dimension_numbers<[1], [0], [0], [1], [0, 0, 1, 1], [], []>} : vector<16x16xf32>, vector<16x512xf32>, vector<16x512xf32> -> vector<16x512xf32>
    %69 = arith.addf %51, %68 : vector<16x512xf32>
    %c0_39 = arith.constant 0 : index
    %c0_40 = arith.constant 0 : index
    %70 = vector.load %arg6[%c0_39, %c0_40] : memref<1x512xf32, #tpu.memory_space<vmem>>, vector<1x512xf32>
    %71 = vector.broadcast %70 : vector<1x512xf32> to vector<16x512xf32>
    %72 = arith.addf %69, %71 : vector<16x512xf32>
    %73 = arith.negf %72 : vector<16x512xf32>
    %74 = math.exp %73 : vector<16x512xf32>
    %cst_41 = arith.constant 1.000000e+00 : f32
    %75 = vector.broadcast %cst_41 : f32 to vector<16x512xf32>
    %76 = arith.addf %75, %74 : vector<16x512xf32>
    %77 = arith.divf %75, %76 : vector<16x512xf32>
    %78 = arith.mulf %72, %77 : vector<16x512xf32>
    %cst_42 = arith.constant dense<0.000000e+00> : vector<512xf32>
    %79 = vector.multi_reduction <add>, %78, %cst_42 [0] : vector<16x512xf32> to vector<512xf32>
    %80 = vector.shape_cast %79 : vector<512xf32> to vector<1x512xf32>
    %c0_43 = arith.constant 0 : index
    %c0_44 = arith.constant 0 : index
    %81 = vector.load %arg7[%c0_43, %c0_44] : memref<512x2xf32, #tpu.memory_space<vmem>>, vector<512x2xf32>
    %cst_45 = arith.constant dense<0.000000e+00> : vector<1x2xf32>
    %82 = tpu.matmul %80, %81, %cst_45 {dimension_numbers = #tpu.dot_dimension_numbers<[1], [0], [0], [1], [0, 0, 1, 1], [], []>} : vector<1x512xf32>, vector<512x2xf32>, vector<1x2xf32> -> vector<1x2xf32>
    %c0_46 = arith.constant 0 : index
    %c0_47 = arith.constant 0 : index
    %83 = vector.load %arg8[%c0_46, %c0_47] : memref<1x2xf32, #tpu.memory_space<vmem>>, vector<1x2xf32>
    %84 = arith.addf %82, %83 : vector<1x2xf32>
    %85 = arith.negf %84 : vector<1x2xf32>
    %86 = math.exp %85 : vector<1x2xf32>
    %cst_48 = arith.constant 1.000000e+00 : f32
    %87 = vector.broadcast %cst_48 : f32 to vector<1x2xf32>
    %88 = arith.addf %87, %86 : vector<1x2xf32>
    %89 = arith.divf %87, %88 : vector<1x2xf32>
    %90 = arith.mulf %84, %89 : vector<1x2xf32>
    %c0_49 = arith.constant 0 : index
    %c0_50 = arith.constant 0 : index
    %91 = vector.load %arg9[%c0_49, %c0_50] : memref<2x512xf32, #tpu.memory_space<vmem>>, vector<2x512xf32>
    %cst_51 = arith.constant dense<0.000000e+00> : vector<1x512xf32>
    %92 = tpu.matmul %90, %91, %cst_51 {dimension_numbers = #tpu.dot_dimension_numbers<[1], [0], [0], [1], [0, 0, 1, 1], [], []>} : vector<1x2xf32>, vector<2x512xf32>, vector<1x512xf32> -> vector<1x512xf32>
    %c0_52 = arith.constant 0 : index
    %c0_53 = arith.constant 0 : index
    %93 = vector.load %arg10[%c0_52, %c0_53] : memref<1x512xf32, #tpu.memory_space<vmem>>, vector<1x512xf32>
    %94 = arith.addf %92, %93 : vector<1x512xf32>
    %95 = arith.negf %94 : vector<1x512xf32>
    %96 = math.exp %95 : vector<1x512xf32>
    %cst_54 = arith.constant 1.000000e+00 : f32
    %97 = vector.broadcast %cst_54 : f32 to vector<1x512xf32>
    %98 = arith.addf %97, %96 : vector<1x512xf32>
    %99 = arith.divf %97, %98 : vector<1x512xf32>
    %100 = vector.broadcast %99 : vector<1x512xf32> to vector<16x512xf32>
    %101 = arith.mulf %78, %100 : vector<16x512xf32>
    %c0_55 = arith.constant 0 : index
    %c0_56 = arith.constant 0 : index
    %102 = vector.load %arg11[%c0_55, %c0_56] : memref<512x128xf32, #tpu.memory_space<vmem>>, vector<512x128xf32>
    %cst_57 = arith.constant dense<0.000000e+00> : vector<16x128xf32>
    %103 = tpu.matmul %101, %102, %cst_57 {dimension_numbers = #tpu.dot_dimension_numbers<[1], [0], [0], [1], [0, 0, 1, 1], [], []>} : vector<16x512xf32>, vector<512x128xf32>, vector<16x128xf32> -> vector<16x128xf32>
    %c0_58 = arith.constant 0 : index
    %c0_59 = arith.constant 0 : index
    %104 = vector.load %arg12[%c0_58, %c0_59] : memref<1x128xf32, #tpu.memory_space<vmem>>, vector<1x128xf32>
    %105 = vector.broadcast %104 : vector<1x128xf32> to vector<16x128xf32>
    %106 = arith.addf %103, %105 : vector<16x128xf32>
    %107 = arith.addf %106, %1 : vector<16x128xf32>
    %c0_60 = arith.constant 0 : index
    %c0_61 = arith.constant 0 : index
    %c0_62 = arith.constant 0 : index
    %108 = vector.load %arg13[%c0_60, %c0_61, %c0_62] : memref<1x16x128xf32, #tpu.memory_space<vmem>>, vector<1x16x128xf32>
    %109 = vector.shape_cast %108 : vector<1x16x128xf32> to vector<16x128xf32>
    %110 = vector.shape_cast %107 : vector<16x128xf32> to vector<1x16x128xf32>
    tpu.vector_store %arg13[%c0_60, %c0_61, %c0_62], %110 {strides = array<i32>} : memref<1x16x128xf32, #tpu.memory_space<vmem>>, vector<1x16x128xf32>,
    return
  }
  func.func @transform_0(%arg0: i32) -> (i32, i32, i32) {
    %c0_i32 = arith.constant 0 : i32
    %c0_i32_0 = arith.constant 0 : i32
    %c0_i32_1 = arith.constant 0 : i32
    return %arg0, %c0_i32, %c0_i32_0 : i32, i32, i32
  }
  func.func @transform_1(%arg0: i32) -> (i32, i32) {
    %c0_i32 = arith.constant 0 : i32
    %c0_i32_0 = arith.constant 0 : i32
    %c0_i32_1 = arith.constant 0 : i32
    return %c0_i32, %c0_i32_0 : i32, i32
  }
  func.func @transform_2(%arg0: i32) -> (i32, i32) {
    %c0_i32 = arith.constant 0 : i32
    %c0_i32_0 = arith.constant 0 : i32
    %c0_i32_1 = arith.constant 0 : i32
    return %c0_i32, %c0_i32_0 : i32, i32
  }
  func.func @transform_3(%arg0: i32) -> (i32, i32, i32) {
    %c0_i32 = arith.constant 0 : i32
    %c0_i32_0 = arith.constant 0 : i32
    %c0_i32_1 = arith.constant 0 : i32
    %c0_i32_2 = arith.constant 0 : i32
    return %c0_i32, %c0_i32_0, %c0_i32_1 : i32, i32, i32
  }
  func.func @transform_4(%arg0: i32) -> (i32, i32, i32) {
    %c0_i32 = arith.constant 0 : i32
    %c0_i32_0 = arith.constant 0 : i32
    %c0_i32_1 = arith.constant 0 : i32
    %c0_i32_2 = arith.constant 0 : i32
    return %c0_i32, %c0_i32_0, %c0_i32_1 : i32, i32, i32
  }
  func.func @transform_5(%arg0: i32) -> (i32, i32) {
    %c0_i32 = arith.constant 0 : i32
    %c0_i32_0 = arith.constant 0 : i32
    %c0_i32_1 = arith.constant 0 : i32
    return %c0_i32, %c0_i32_0 : i32, i32
  }
  func.func @transform_6(%arg0: i32) -> (i32, i32) {
    %c0_i32 = arith.constant 0 : i32
    %c0_i32_0 = arith.constant 0 : i32
    %c0_i32_1 = arith.constant 0 : i32
    return %c0_i32, %c0_i32_0 : i32, i32
  }
  func.func @transform_7(%arg0: i32) -> (i32, i32) {
    %c0_i32 = arith.constant 0 : i32
    %c0_i32_0 = arith.constant 0 : i32
    %c0_i32_1 = arith.constant 0 : i32
    return %c0_i32, %c0_i32_0 : i32, i32
  }
  func.func @transform_8(%arg0: i32) -> (i32, i32) {
    %c0_i32 = arith.constant 0 : i32
    %c0_i32_0 = arith.constant 0 : i32
    %c0_i32_1 = arith.constant 0 : i32
    return %c0_i32, %c0_i32_0 : i32, i32
  }
  func.func @transform_9(%arg0: i32) -> (i32, i32) {
    %c0_i32 = arith.constant 0 : i32
    %c0_i32_0 = arith.constant 0 : i32
    %c0_i32_1 = arith.constant 0 : i32
    return %c0_i32, %c0_i32_0 : i32, i32
  }
  func.func @transform_10(%arg0: i32) -> (i32, i32) {
    %c0_i32 = arith.constant 0 : i32
    %c0_i32_0 = arith.constant 0 : i32
    %c0_i32_1 = arith.constant 0 : i32
    return %c0_i32, %c0_i32_0 : i32, i32
  }
  func.func @transform_11(%arg0: i32) -> (i32, i32) {
    %c0_i32 = arith.constant 0 : i32
    %c0_i32_0 = arith.constant 0 : i32
    %c0_i32_1 = arith.constant 0 : i32
    return %c0_i32, %c0_i32_0 : i32, i32
  }
  func.func @transform_12(%arg0: i32) -> (i32, i32, i32) {
    %c0_i32 = arith.constant 0 : i32
    %c0_i32_0 = arith.constant 0 : i32
    %c0_i32_1 = arith.constant 0 : i32
    return %arg0, %c0_i32, %c0_i32_0 : i32, i32, i32
  }
}

</mosaic_0001>

<llo_original>
// kernel: mbconv_block_bw.1
$region0: #{mbconv_block_bw.1}
  #allocation0 [shape = 'u32[]', space=smem, size = 0x4, offset = 0x4, fixed_abs, tag = 'smem constant byte address 0x4 - core index']
  #allocation1 [shape = 'u32[144,128]{1,0:T(1,128)}', space=vmem, size = 0x12000, scoped, tag = 'internal scratch']
  %s0 = inlined_call_operand.vmem [shape: f32[2,16,128], index: 0, kind: input, shape index: {}]
  %s1 = inlined_call_operand.vmem [shape: f32[128,512], index: 1, kind: input, shape index: {}]
  %s2 = inlined_call_operand.vmem [shape: f32[1,512], index: 2, kind: input, shape index: {}]
  %s3 = inlined_call_operand.vmem [shape: f32[9,1,512], index: 3, kind: input, shape index: {}]
  %s4 = inlined_call_operand.vmem [shape: f32[3,16,16], index: 4, kind: input, shape index: {}]
  %s5 = inlined_call_operand.vmem [shape: f32[1,512], index: 5, kind: input, shape index: {}]
  %s6 = inlined_call_operand.vmem [shape: f32[512,2], index: 6, kind: input, shape index: {}]
  %s7 = inlined_call_operand.vmem [shape: f32[1,2], index: 7, kind: input, shape index: {}]
  %s8 = inlined_call_operand.vmem [shape: f32[2,512], index: 8, kind: input, shape index: {}]
  %s9 = inlined_call_operand.vmem [shape: f32[1,512], index: 9, kind: input, shape index: {}]
  %s10 = inlined_call_operand.vmem [shape: f32[512,128], index: 10, kind: input, shape index: {}]
  %s11 = inlined_call_operand.vmem [shape: f32[1,128], index: 11, kind: input, shape index: {}]
  %s12 = inlined_call_operand.vmem [shape: f32[2,16,128], index: 12, kind: output, shape index: {}]
  %s13 = sld [smem:[#allocation0]]
  $region81: #{mbconv_block_bw.1} parent=0
    _
  %s15 = ssub.s32 1, %s13
  %s16 = scalar_select 0, %s15, %s13
  loop: start=0, step=1, limit=4
  $region2: #{mbconv_block_bw.1} parent=0 // loop_pre_header
    _
  $region3: #{mbconv_block_bw.1} parent=0 // loop_header
    %s18 = sphi 0, %s22
    %p19 = scmp.ge.s32.totalorder %s18, 4
    %s28 = sphi 0, %s30
    %s31 = sphi 0, %s28
    %s32 = sphi 0, %s31
    %s48 = sphi 0, %s32
    %s52 = sphi 0, %s52
    %s54 = sphi 0, %s52
    %s55 = sphi 0, %s54
    %s69 = sphi 0, %s55
    %s73 = sphi 0, %s73
    %s75 = sphi 0, %s73
    %s76 = sphi 0, %s75
    %s90 = sphi 0, %s76
    %s94 = sphi 0, %s94
    %s96 = sphi 0, %s94
    %s97 = sphi 0, %s96
    %s111 = sphi 0, %s97
    %s115 = sphi 0, %s115
    %s117 = sphi 0, %s115
    %s118 = sphi 0, %s117
    %s132 = sphi 0, %s118
    %s136 = sphi 0, %s136
    %s138 = sphi 0, %s136
    %s139 = sphi 0, %s138
    %s153 = sphi 0, %s139
    %s157 = sphi 0, %s157
    %s159 = sphi 0, %s157
    %s160 = sphi 0, %s159
    %s174 = sphi 0, %s160
    %s178 = sphi 0, %s178
    %s180 = sphi 0, %s178
    %s181 = sphi 0, %s180
    %s195 = sphi 0, %s181
    %s199 = sphi 0, %s199
    %s201 = sphi 0, %s199
    %s202 = sphi 0, %s201
    %s216 = sphi 0, %s202
    %s220 = sphi 0, %s220
    %s222 = sphi 0, %s220
    %s223 = sphi 0, %s222
    %s237 = sphi 0, %s223
    %s241 = sphi 0, %s241
    %s243 = sphi 0, %s241
    %s244 = sphi 0, %s243
    %s258 = sphi 0, %s244
    %s262 = sphi 0, %s262
    %s264 = sphi 0, %s262
    %s265 = sphi 0, %s264
    %s279 = sphi 0, %s265
    %s285 = sphi 0, %s287
    %s288 = sphi 0, %s285
    %s289 = sphi 0, %s288
    %s305 = sphi 0, %s289
  $region4: #{mbconv_block_bw.1} parent=0 // loop_header_branch
    %21 = sbr.rel (%p19) target = $region8
  $region5: #{mbconv_block_bw.1} parent=0 // loop_body
    %s23 = ssub.s32 %s18, 1
    %s24 = ssub.s32 %s18, 2
    %s25 = sadd.s32 %s18, 1
    %s26 = ssub.s32 %s18, %s25
    %p27 = scmp.eq.s32.totalorder %s26, 0
    %s29 = sadd.s32 %s28, 1
    %s30 = scalar_select %p27, %s28, %s29
    %p33 = pneg %p27
    %p34 = scmp.eq.s32.totalorder %s18, 1
    %p35 = por %p33, %p34
    %p36 = scmp.ne.s32.totalorder %s28, %s31
    %p37 = scmp.eq.s32.totalorder %s18, 0
    %p38 = por %p36, %p37
    %p39 = scmp.ne.s32.totalorder %s28, %s31
    %p40 = scmp.eq.s32.totalorder %s23, 1
    %p41 = por %p39, %p40
    %p42 = scmp.ne.s32.totalorder %s31, %s32
    %p43 = scmp.eq.s32.totalorder %s23, 0
    %p44 = por %p42, %p43
    %p45 = scmp.ne.s32.totalorder %s31, %s32
    %p46 = scmp.eq.s32.totalorder %s24, 1
    %p47 = por %p45, %p46
    %p49 = scmp.ne.s32.totalorder %s32, %s48
    %p50 = scmp.eq.s32.totalorder %s24, 0
    %p51 = por %p49, %p50
    %s53 = sadd.s32 %s52, 1
    %p56 = scmp.eq.s32.totalorder %s18, 1
    %p57 = scmp.ne.s32.totalorder %s52, %s54
    %p58 = scmp.eq.s32.totalorder %s18, 0
    %p59 = por %p57, %p58
    %p60 = scmp.ne.s32.totalorder %s52, %s54
    %p61 = scmp.eq.s32.totalorder %s23, 1
    %p62 = por %p60, %p61
    %p63 = scmp.ne.s32.totalorder %s54, %s55
    %p64 = scmp.eq.s32.totalorder %s23, 0
    %p65 = por %p63, %p64
    %p66 = scmp.ne.s32.totalorder %s54, %s55
    %p67 = scmp.eq.s32.totalorder %s24, 1
    %p68 = por %p66, %p67
    %p70 = scmp.ne.s32.totalorder %s55, %s69
    %p71 = scmp.eq.s32.totalorder %s24, 0
    %p72 = por %p70, %p71
    %s74 = sadd.s32 %s73, 1
    %p77 = scmp.eq.s32.totalorder %s18, 1
    %p78 = scmp.ne.s32.totalorder %s73, %s75
    %p79 = scmp.eq.s32.totalorder %s18, 0
    %p80 = por %p78, %p79
    %p81 = scmp.ne.s32.totalorder %s73, %s75
    %p82 = scmp.eq.s32.totalorder %s23, 1
    %p83 = por %p81, %p82
    %p84 = scmp.ne.s32.totalorder %s75, %s76
    %p85 = scmp.eq.s32.totalorder %s23, 0
    %p86 = por %p84, %p85
    %p87 = scmp.ne.s32.totalorder %s75, %s76
    %p88 = scmp.eq.s32.totalorder %s24, 1
    %p89 = por %p87, %p88
    %p91 = scmp.ne.s32.totalorder %s76, %s90
    %p92 = scmp.eq.s32.totalorder %s24, 0
    %p93 = por %p91, %p92
    %s95 = sadd.s32 %s94, 1
    %p98 = scmp.eq.s32.totalorder %s18, 1
    %p99 = scmp.ne.s32.totalorder %s94, %s96
    %p100 = scmp.eq.s32.totalorder %s18, 0
    %p101 = por %p99, %p100
    %p102 = scmp.ne.s32.totalorder %s94, %s96
    %p103 = scmp.eq.s32.totalorder %s23, 1
    %p104 = por %p102, %p103
    %p105 = scmp.ne.s32.totalorder %s96, %s97
    %p106 = scmp.eq.s32.totalorder %s23, 0
    %p107 = por %p105, %p106
    %p108 = scmp.ne.s32.totalorder %s96, %s97
    %p109 = scmp.eq.s32.totalorder %s24, 1
    %p110 = por %p108, %p109
    %p112 = scmp.ne.s32.totalorder %s97, %s111
    %p113 = scmp.eq.s32.totalorder %s24, 0
    %p114 = por %p112, %p113
    %s116 = sadd.s32 %s115, 1
    %p119 = scmp.eq.s32.totalorder %s18, 1
    %p120 = scmp.ne.s32.totalorder %s115, %s117
    %p121 = scmp.eq.s32.totalorder %s18, 0
    %p122 = por %p120, %p121
    %p123 = scmp.ne.s32.totalorder %s115, %s117
    %p124 = scmp.eq.s32.totalorder %s23, 1
    %p125 = por %p123, %p124
    %p126 = scmp.ne.s32.totalorder %s117, %s118
    %p127 = scmp.eq.s32.totalorder %s23, 0
    %p128 = por %p126, %p127
    %p129 = scmp.ne.s32.totalorder %s117, %s118
    %p130 = scmp.eq.s32.totalorder %s24, 1
    %p131 = por %p129, %p130
    %p133 = scmp.ne.s32.totalorder %s118, %s132
    %p134 = scmp.eq.s32.totalorder %s24, 0
    %p135 = por %p133, %p134
    %s137 = sadd.s32 %s136, 1
    %p140 = scmp.eq.s32.totalorder %s18, 1
    %p141 = scmp.ne.s32.totalorder %s136, %s138
    %p142 = scmp.eq.s32.totalorder %s18, 0
    %p143 = por %p141, %p142
    %p144 = scmp.ne.s32.totalorder %s136, %s138
    %p145 = scmp.eq.s32.totalorder %s23, 1
    %p146 = por %p144, %p145
    %p147 = scmp.ne.s32.totalorder %s138, %s139
    %p148 = scmp.eq.s32.totalorder %s23, 0
    %p149 = por %p147, %p148
    %p150 = scmp.ne.s32.totalorder %s138, %s139
    %p151 = scmp.eq.s32.totalorder %s24, 1
    %p152 = por %p150, %p151
    %p154 = scmp.ne.s32.totalorder %s139, %s153
    %p155 = scmp.eq.s32.totalorder %s24, 0
    %p156 = por %p154, %p155
    %s158 = sadd.s32 %s157, 1
    %p161 = scmp.eq.s32.totalorder %s18, 1
    %p162 = scmp.ne.s32.totalorder %s157, %s159
    %p163 = scmp.eq.s32.totalorder %s18, 0
    %p164 = por %p162, %p163
    %p165 = scmp.ne.s32.totalorder %s157, %s159
    %p166 = scmp.eq.s32.totalorder %s23, 1
    %p167 = por %p165, %p166
    %p168 = scmp.ne.s32.totalorder %s159, %s160
    %p169 = scmp.eq.s32.totalorder %s23, 0
    %p170 = por %p168, %p169
    %p171 = scmp.ne.s32.totalorder %s159, %s160
    %p172 = scmp.eq.s32.totalorder %s24, 1
    %p173 = por %p171, %p172
    %p175 = scmp.ne.s32.totalorder %s160, %s174
    %p176 = scmp.eq.s32.totalorder %s24, 0
    %p177 = por %p175, %p176
    %s179 = sadd.s32 %s178, 1
    %p182 = scmp.eq.s32.totalorder %s18, 1
    %p183 = scmp.ne.s32.totalorder %s178, %s180
    %p184 = scmp.eq.s32.totalorder %s18, 0
    %p185 = por %p183, %p184
    %p186 = scmp.ne.s32.totalorder %s178, %s180
    %p187 = scmp.eq.s32.totalorder %s23, 1
    %p188 = por %p186, %p187
    %p189 = scmp.ne.s32.totalorder %s180, %s181
    %p190 = scmp.eq.s32.totalorder %s23, 0
    %p191 = por %p189, %p190
    %p192 = scmp.ne.s32.totalorder %s180, %s181
    %p193 = scmp.eq.s32.totalorder %s24, 1
    %p194 = por %p192, %p193
    %p196 = scmp.ne.s32.totalorder %s181, %s195
    %p197 = scmp.eq.s32.totalorder %s24, 0
    %p198 = por %p196, %p197
    %s200 = sadd.s32 %s199, 1
    %p203 = scmp.eq.s32.totalorder %s18, 1
    %p204 = scmp.ne.s32.totalorder %s199, %s201
    %p205 = scmp.eq.s32.totalorder %s18, 0
    %p206 = por %p204, %p205
    %p207 = scmp.ne.s32.totalorder %s199, %s201
    %p208 = scmp.eq.s32.totalorder %s23, 1
    %p209 = por %p207, %p208
    %p210 = scmp.ne.s32.totalorder %s201, %s202
    %p211 = scmp.eq.s32.totalorder %s23, 0
    %p212 = por %p210, %p211
    %p213 = scmp.ne.s32.totalorder %s201, %s202
    %p214 = scmp.eq.s32.totalorder %s24, 1
    %p215 = por %p213, %p214
    %p217 = scmp.ne.s32.totalorder %s202, %s216
    %p218 = scmp.eq.s32.totalorder %s24, 0
    %p219 = por %p217, %p218
    %s221 = sadd.s32 %s220, 1
    %p224 = scmp.eq.s32.totalorder %s18, 1
    %p225 = scmp.ne.s32.totalorder %s220, %s222
    %p226 = scmp.eq.s32.totalorder %s18, 0
    %p227 = por %p225, %p226
    %p228 = scmp.ne.s32.totalorder %s220, %s222
    %p229 = scmp.eq.s32.totalorder %s23, 1
    %p230 = por %p228, %p229
    %p231 = scmp.ne.s32.totalorder %s222, %s223
    %p232 = scmp.eq.s32.totalorder %s23, 0
    %p233 = por %p231, %p232
    %p234 = scmp.ne.s32.totalorder %s222, %s223
    %p235 = scmp.eq.s32.totalorder %s24, 1
    %p236 = por %p234, %p235
    %p238 = scmp.ne.s32.totalorder %s223, %s237
    %p239 = scmp.eq.s32.totalorder %s24, 0
    %p240 = por %p238, %p239
    %s242 = sadd.s32 %s241, 1
    %p245 = scmp.eq.s32.totalorder %s18, 1
    %p246 = scmp.ne.s32.totalorder %s241, %s243
    %p247 = scmp.eq.s32.totalorder %s18, 0
    %p248 = por %p246, %p247
    %p249 = scmp.ne.s32.totalorder %s241, %s243
    %p250 = scmp.eq.s32.totalorder %s23, 1
    %p251 = por %p249, %p250
    %p252 = scmp.ne.s32.totalorder %s243, %s244
    %p253 = scmp.eq.s32.totalorder %s23, 0
    %p254 = por %p252, %p253
    %p255 = scmp.ne.s32.totalorder %s243, %s244
    %p256 = scmp.eq.s32.totalorder %s24, 1
    %p257 = por %p255, %p256
    %p259 = scmp.ne.s32.totalorder %s244, %s258
    %p260 = scmp.eq.s32.totalorder %s24, 0
    %p261 = por %p259, %p260
    %s263 = sadd.s32 %s262, 1
    %p266 = scmp.eq.s32.totalorder %s18, 1
    %p267 = scmp.ne.s32.totalorder %s262, %s264
    %p268 = scmp.eq.s32.totalorder %s18, 0
    %p269 = por %p267, %p268
    %p270 = scmp.ne.s32.totalorder %s262, %s264
    %p271 = scmp.eq.s32.totalorder %s23, 1
    %p272 = por %p270, %p271
    %p273 = scmp.ne.s32.totalorder %s264, %s265
    %p274 = scmp.eq.s32.totalorder %s23, 0
    %p275 = por %p273, %p274
    %p276 = scmp.ne.s32.totalorder %s264, %s265
    %p277 = scmp.eq.s32.totalorder %s24, 1
    %p278 = por %p276, %p277
    %p280 = scmp.ne.s32.totalorder %s265, %s279
    %p281 = scmp.eq.s32.totalorder %s24, 0
    %p282 = por %p280, %p281
    %s283 = ssub.s32 %s18, %s25
    %p284 = scmp.eq.s32.totalorder %s283, 0
    %s286 = sadd.s32 %s285, 1
    %s287 = scalar_select %p284, %s285, %s286
    %p290 = pneg %p284
    %p291 = scmp.eq.s32.totalorder %s18, 1
    %p292 = por %p290, %p291
    %p293 = scmp.ne.s32.totalorder %s285, %s288
    %p294 = scmp.eq.s32.totalorder %s18, 0
    %p295 = por %p293, %p294
    %p296 = scmp.ne.s32.totalorder %s285, %s288
    %p297 = scmp.eq.s32.totalorder %s23, 1
    %p298 = por %p296, %p297
    %p299 = scmp.ne.s32.totalorder %s288, %s289
    %p300 = scmp.eq.s32.totalorder %s23, 0
    %p301 = por %p299, %p300
    %p302 = scmp.ne.s32.totalorder %s288, %s289
    %p303 = scmp.eq.s32.totalorder %s24, 1
    %p304 = por %p302, %p303
    %p306 = scmp.ne.s32.totalorder %s289, %s305
    %p307 = scmp.eq.s32.totalorder %s24, 0
    %p308 = por %p306, %p307
    %p309 = scmp.le.s32.totalorder 1, %s18
    %p310 = scmp.lt.s32.totalorder %s18, 3
    %p311 = pnand %p309, %p310
    %p312 = pneg %p311
    // Predicated region
    $region9: #{mbconv_block_bw.1} parent=5 // pred_check
      _
    $region10: #{mbconv_block_bw.1} parent=5 // pred_check_branch
      %314 = sbr.rel (%p311) target = $region12
    $region11: #{mbconv_block_bw.1} parent=5 // pred_region
      %s315 = ssub.s32 %s18, 1
      // Predicated region
      $region13: #{mbconv_block_bw.1} parent=11 // pred_check
        %p316 = pneg %p65
      $region14: #{mbconv_block_bw.1} parent=11 // pred_check_branch
        %318 = sbr.rel (%p316) target = $region16
      $region15: #{mbconv_block_bw.1} parent=11 // pred_region
        _
      $region16: #{mbconv_block_bw.1} parent=11 // pred_fallthru
        _
      // Predicated region
      $region17: #{mbconv_block_bw.1} parent=11 // pred_check
        %p319 = pneg %p86
      $region18: #{mbconv_block_bw.1} parent=11 // pred_check_branch
        %321 = sbr.rel (%p319) target = $region20
      $region19: #{mbconv_block_bw.1} parent=11 // pred_region
        _
      $region20: #{mbconv_block_bw.1} parent=11 // pred_fallthru
        _
      // Predicated region
      $region21: #{mbconv_block_bw.1} parent=11 // pred_check
        %p322 = pneg %p107
      $region22: #{mbconv_block_bw.1} parent=11 // pred_check_branch
        %324 = sbr.rel (%p322) target = $region24
      $region23: #{mbconv_block_bw.1} parent=11 // pred_region
        _
      $region24: #{mbconv_block_bw.1} parent=11 // pred_fallthru
        _
      // Predicated region
      $region25: #{mbconv_block_bw.1} parent=11 // pred_check
        %p325 = pneg %p128
      $region26: #{mbconv_block_bw.1} parent=11 // pred_check_branch
        %327 = sbr.rel (%p325) target = $region28
      $region27: #{mbconv_block_bw.1} parent=11 // pred_region
        _
      $region28: #{mbconv_block_bw.1} parent=11 // pred_fallthru
        _
      // Predicated region
      $region29: #{mbconv_block_bw.1} parent=11 // pred_check
        %p328 = pneg %p149
      $region30: #{mbconv_block_bw.1} parent=11 // pred_check_branch
        %330 = sbr.rel (%p328) target = $region32
      $region31: #{mbconv_block_bw.1} parent=11 // pred_region
        _
      $region32: #{mbconv_block_bw.1} parent=11 // pred_fallthru
        _
      // Predicated region
      $region33: #{mbconv_block_bw.1} parent=11 // pred_check
        %p331 = pneg %p170
      $region34: #{mbconv_block_bw.1} parent=11 // pred_check_branch
        %333 = sbr.rel (%p331) target = $region36
      $region35: #{mbconv_block_bw.1} parent=11 // pred_region
        _
      $region36: #{mbconv_block_bw.1} parent=11 // pred_fallthru
        _
      // Predicated region
      $region37: #{mbconv_block_bw.1} parent=11 // pred_check
        %p334 = pneg %p191
      $region38: #{mbconv_block_bw.1} parent=11 // pred_check_branch
        %336 = sbr.rel (%p334) target = $region40
      $region39: #{mbconv_block_bw.1} parent=11 // pred_region
        _
      $region40: #{mbconv_block_bw.1} parent=11 // pred_fallthru
        _
      // Predicated region
      $region41: #{mbconv_block_bw.1} parent=11 // pred_check
        %p337 = pneg %p212
      $region42: #{mbconv_block_bw.1} parent=11 // pred_check_branch
        %339 = sbr.rel (%p337) target = $region44
      $region43: #{mbconv_block_bw.1} parent=11 // pred_region
        _
      $region44: #{mbconv_block_bw.1} parent=11 // pred_fallthru
        _
      // Predicated region
      $region45: #{mbconv_block_bw.1} parent=11 // pred_check
        %p340 = pneg %p233
      $region46: #{mbconv_block_bw.1} parent=11 // pred_check_branch
        %342 = sbr.rel (%p340) target = $region48
      $region47: #{mbconv_block_bw.1} parent=11 // pred_region
        _
      $region48: #{mbconv_block_bw.1} parent=11 // pred_fallthru
        _
      // Predicated region
      $region49: #{mbconv_block_bw.1} parent=11 // pred_check
        %p343 = pneg %p254
      $region50: #{mbconv_block_bw.1} parent=11 // pred_check_branch
        %345 = sbr.rel (%p343) target = $region52
      $region51: #{mbconv_block_bw.1} parent=11 // pred_region
        _
      $region52: #{mbconv_block_bw.1} parent=11 // pred_fallthru
        _
      // Predicated region
      $region53: #{mbconv_block_bw.1} parent=11 // pred_check
        %p346 = pneg %p275
      $region54: #{mbconv_block_bw.1} parent=11 // pred_check_branch
        %348 = sbr.rel (%p346) target = $region56
      $region55: #{mbconv_block_bw.1} parent=11 // pred_region
        _
      $region56: #{mbconv_block_bw.1} parent=11 // pred_fallthru
        _
    $region12: #{mbconv_block_bw.1} parent=5 // pred_fallthru
      _
    %p349 = scmp.lt.s32.totalorder %s18, 2
    // Predicated region
    $region57: #{mbconv_block_bw.1} parent=5 // pred_check
      %p350 = pneg %p349
    $region58: #{mbconv_block_bw.1} parent=5 // pred_check_branch
      %352 = sbr.rel (%p350) target = $region60
    $region59: #{mbconv_block_bw.1} parent=5 // pred_region
      // Predicated region
      $region61: #{mbconv_block_bw.1} parent=59 // pred_check
        %p353 = pneg %p38
      $region62: #{mbconv_block_bw.1} parent=59 // pred_check_branch
        %355 = sbr.rel (%p353) target = $region64
      $region63: #{mbconv_block_bw.1} parent=59 // pred_region
        %p356 = scmp.lt.s32.totalorder %s18, 1
        %s357 = scalar_select %p356, %s18, 1
        %s358 = smul.addr %s357, 2
        %s359 = smul.addr %s358, 8
        %s360 = scalar_lea.vmem %s0, %s359
      $region64: #{mbconv_block_bw.1} parent=59 // pred_fallthru
        _
    $region60: #{mbconv_block_bw.1} parent=5 // pred_fallthru
      _
    %p361 = scmp.le.s32.totalorder 1, %s18
    %p362 = scmp.lt.s32.totalorder %s18, 3
    %p363 = pnand %p361, %p362
    %p364 = pneg %p363
    // Predicated region
    $region65: #{mbconv_block_bw.1} parent=5 // pred_check
      _
    $region66: #{mbconv_block_bw.1} parent=5 // pred_check_branch
      %366 = sbr.rel (%p363) target = $region68
    $region67: #{mbconv_block_bw.1} parent=5 // pred_region
      %s367 = ssub.s32 %s18, 1
      %p368 = scmp.lt.s32.totalorder %s23, 1
      %s369 = scalar_select %p368, %s23, 1
      %s370 = smul.addr %s369, 2
      %s371 = smul.addr %s370, 8
      %s372 = scalar_lea.vmem %s0, %s371
      %p373 = pneg %p44
      %p374 = pneg %p41
      %p375 = pneg %p65
      %p376 = pneg %p62
      %p377 = pneg %p86
      %p378 = pneg %p83
      %p379 = pneg %p107
      %p380 = pneg %p104
      %p381 = pneg %p128
      %p382 = pneg %p125
      %p383 = pneg %p149
      %p384 = pneg %p146
      %p385 = pneg %p170
      %p386 = pneg %p167
      %p387 = pneg %p191
      %p388 = pneg %p188
      %p389 = pneg %p212
      %p390 = pneg %p209
      %p391 = pneg %p233
      %p392 = pneg %p230
      %p393 = pneg %p254
      %p394 = pneg %p251
      %p395 = pneg %p275
      %p396 = pneg %p272
      %p397 = pneg %p301
      %p398 = pneg %p298
      %p399 = scmp.lt.s32.totalorder %s23, 1
      %s400 = scalar_select %p399, %s23, 1
      %s401 = smul.addr %s400, 2
      %s402 = smul.addr %s401, 8
      %s403 = scalar_lea.vmem %s12, %s402
      %p404 = scmp.lt.s32.totalorder %s23, 1
      %s405 = scalar_select %p404, %s23, 1
      %s406 = smul.addr %s405, 2
      %s407 = smul.addr %s406, 8
      %s408 = scalar_lea.vmem %s0, %s407
      %p409 = scmp.lt.s32.totalorder %s23, 1
      %s410 = scalar_select %p409, %s23, 1
      %s411 = smul.addr %s410, 2
      %s412 = smul.addr %s411, 8
      %s413 = scalar_lea.vmem %s12, %s412
      %v414 = vld [vmem:[%s408] sm:$0xff]
      %v415 = vld [vmem:[%s408 + $0x8] sm:$0xff]
      %v416 = vld [vmem:[%s1] sm:$0xff]
      %v417 = vld [vmem:[%s1 + $0x8] sm:$0xff]
      %v418 = vld [vmem:[%s1 + $0x10] sm:$0xff]
      %v419 = vld [vmem:[%s1 + $0x18] sm:$0xff]
      %v420 = vld [vmem:[%s1 + $0x20] sm:$0xff]
      %v421 = vld [vmem:[%s1 + $0x28] sm:$0xff]
      %v422 = vld [vmem:[%s1 + $0x30] sm:$0xff]
      %v423 = vld [vmem:[%s1 + $0x38] sm:$0xff]
      %v424 = vld [vmem:[%s1 + $0x40] sm:$0xff]
      %v425 = vld [vmem:[%s1 + $0x48] sm:$0xff]
      %v426 = vld [vmem:[%s1 + $0x50] sm:$0xff]
      %v427 = vld [vmem:[%s1 + $0x58] sm:$0xff]
      %v428 = vld [vmem:[%s1 + $0x60] sm:$0xff]
      %v429 = vld [vmem:[%s1 + $0x68] sm:$0xff]
      %v430 = vld [vmem:[%s1 + $0x70] sm:$0xff]
      %v431 = vld [vmem:[%s1 + $0x78] sm:$0xff]
      %v432 = vld [vmem:[%s1 + $0x80] sm:$0xff]
      %v433 = vld [vmem:[%s1 + $0x88] sm:$0xff]
      %v434 = vld [vmem:[%s1 + $0x90] sm:$0xff]
      %v435 = vld [vmem:[%s1 + $0x98] sm:$0xff]
      %v436 = vld [vmem:[%s1 + $0xa0] sm:$0xff]
      %v437 = vld [vmem:[%s1 + $0xa8] sm:$0xff]
      %v438 = vld [vmem:[%s1 + $0xb0] sm:$0xff]
      %v439 = vld [vmem:[%s1 + $0xb8] sm:$0xff]
      %v440 = vld [vmem:[%s1 + $0xc0] sm:$0xff]
      %v441 = vld [vmem:[%s1 + $0xc8] sm:$0xff]
      %v442 = vld [vmem:[%s1 + $0xd0] sm:$0xff]
      %v443 = vld [vmem:[%s1 + $0xd8] sm:$0xff]
      %v444 = vld [vmem:[%s1 + $0xe0] sm:$0xff]
      %v445 = vld [vmem:[%s1 + $0xe8] sm:$0xff]
      %v446 = vld [vmem:[%s1 + $0xf0] sm:$0xff]
      %v447 = vld [vmem:[%s1 + $0xf8] sm:$0xff]
      %v448 = vld [vmem:[%s1 + $0x100] sm:$0xff]
      %v449 = vld [vmem:[%s1 + $0x108] sm:$0xff]
      %v450 = vld [vmem:[%s1 + $0x110] sm:$0xff]
      %v451 = vld [vmem:[%s1 + $0x118] sm:$0xff]
      %v452 = vld [vmem:[%s1 + $0x120] sm:$0xff]
      %v453 = vld [vmem:[%s1 + $0x128] sm:$0xff]
      %v454 = vld [vmem:[%s1 + $0x130] sm:$0xff]
      %v455 = vld [vmem:[%s1 + $0x138] sm:$0xff]
      %v456 = vld [vmem:[%s1 + $0x140] sm:$0xff]
      %v457 = vld [vmem:[%s1 + $0x148] sm:$0xff]
      %v458 = vld [vmem:[%s1 + $0x150] sm:$0xff]
      %v459 = vld [vmem:[%s1 + $0x158] sm:$0xff]
      %v460 = vld [vmem:[%s1 + $0x160] sm:$0xff]
      %v461 = vld [vmem:[%s1 + $0x168] sm:$0xff]
      %v462 = vld [vmem:[%s1 + $0x170] sm:$0xff]
      %v463 = vld [vmem:[%s1 + $0x178] sm:$0xff]
      %v464 = vld [vmem:[%s1 + $0x180] sm:$0xff]
      %v465 = vld [vmem:[%s1 + $0x188] sm:$0xff]
      %v466 = vld [vmem:[%s1 + $0x190] sm:$0xff]
      %v467 = vld [vmem:[%s1 + $0x198] sm:$0xff]
      %v468 = vld [vmem:[%s1 + $0x1a0] sm:$0xff]
      %v469 = vld [vmem:[%s1 + $0x1a8] sm:$0xff]
      %v470 = vld [vmem:[%s1 + $0x1b0] sm:$0xff]
      %v471 = vld [vmem:[%s1 + $0x1b8] sm:$0xff]
      %v472 = vld [vmem:[%s1 + $0x1c0] sm:$0xff]
      %v473 = vld [vmem:[%s1 + $0x1c8] sm:$0xff]
      %v474 = vld [vmem:[%s1 + $0x1d0] sm:$0xff]
      %v475 = vld [vmem:[%s1 + $0x1d8] sm:$0xff]
      %v476 = vld [vmem:[%s1 + $0x1e0] sm:$0xff]
      %v477 = vld [vmem:[%s1 + $0x1e8] sm:$0xff]
      %v478 = vld [vmem:[%s1 + $0x1f0] sm:$0xff]
      %v479 = vld [vmem:[%s1 + $0x1f8] sm:$0xff]
      %v480 = vld [vmem:[%s2] sm:$0xf]
      %v482 = vlaneseq
      %v483 = vshrl.u32 %v482, 7
      %v484 = vsub.s32 0, %v483
      %v485 = vrot.slane %v480, %v484
      %v486 = vlaneseq
      %v487 = vshrl.u32 %v486, 7
      %v488 = vsub.s32 1, %v487
      %v489 = vrot.slane %v480, %v488
      %v490 = vlaneseq
      %v491 = vshrl.u32 %v490, 7
      %v492 = vsub.s32 2, %v491
      %v493 = vrot.slane %v480, %v492
      %v494 = vlaneseq
      %v495 = vshrl.u32 %v494, 7
      %v496 = vsub.s32 3, %v495
      %v497 = vrot.slane %v480, %v496
      %502 = vmatprep.subr.mxu0 %v477
      %503 = vmatpush1.msra.mxu0 %v476
      %504 = vmatprep.subr.mxu0 %v473
      %505 = vmatpush1.msra.mxu0 %v472
      %506 = vmatprep.subr.mxu0 %v469
      %507 = vmatpush1.msra.mxu0 %v468
      %508 = vmatprep.subr.mxu0 %v465
      %509 = vmatpush1.msra.mxu0 %v464
      %510 = vmatprep.subr.mxu0 %v461
      %511 = vmatpush1.msra.mxu0 %v460
      %512 = vmatprep.subr.mxu0 %v457
      %513 = vmatpush1.msra.mxu0 %v456
      %514 = vmatprep.subr.mxu0 %v453
      %515 = vmatpush1.msra.mxu0 %v452
      %516 = vmatprep.subr.mxu0 %v449
      %517 = vmatpush1.msra.mxu0 %v448
      %518 = vmatprep.subr.mxu0 %v445
      %519 = vmatpush1.msra.mxu0 %v444
      %520 = vmatprep.subr.mxu0 %v441
      %521 = vmatpush1.msra.mxu0 %v440
      %522 = vmatprep.subr.mxu0 %v437
      %523 = vmatpush1.msra.mxu0 %v436
      %524 = vmatprep.subr.mxu0 %v433
      %525 = vmatpush1.msra.mxu0 %v432
      %526 = vmatprep.subr.mxu0 %v429
      %527 = vmatpush1.msra.mxu0 %v428
      %528 = vmatprep.subr.mxu0 %v425
      %529 = vmatpush1.msra.mxu0 %v424
      %530 = vmatprep.subr.mxu0 %v421
      %531 = vmatpush1.msra.mxu0 %v420
      %532 = vmatprep.subr.mxu0 %v417
      %533 = vmatpush1.msra.mxu0 %v416
      %534 = vmatprep.subr.mxu0 0.0
      %535 = vmatpush2.msra.mxu0 0.0
      %536 = vmatprep.subr.mxu0 0.0
      %537 = vmatpush2.msra.mxu0 0.0
      %538 = vmatprep.subr.mxu0 0.0
      %539 = vmatpush2.msra.mxu0 0.0
      %540 = vmatprep.subr.mxu0 0.0
      %541 = vmatpush2.msra.mxu0 0.0
      %542 = vmatprep.subr.mxu0 0.0
      %543 = vmatpush2.msra.mxu0 0.0
      %544 = vmatprep.subr.mxu0 0.0
      %545 = vmatpush2.msra.mxu0 0.0
      %546 = vmatprep.subr.mxu0 0.0
      %547 = vmatpush2.msra.mxu0 0.0
      %548 = vmatprep.subr.mxu0 0.0
      %549 = vmatpush2.msra.mxu0 0.0
      %550 = vmatprep.subr.mxu0 0.0
      %551 = vmatpush2.msra.mxu0 0.0
      %552 = vmatprep.subr.mxu0 0.0
      %553 = vmatpush2.msra.mxu0 0.0
      %554 = vmatprep.subr.mxu0 0.0
      %555 = vmatpush2.msra.mxu0 0.0
      %556 = vmatprep.subr.mxu0 0.0
      %557 = vmatpush2.msra.mxu0 0.0
      %558 = vmatprep.subr.mxu0 0.0
      %559 = vmatpush2.msra.mxu0 0.0
      %560 = vmatprep.subr.mxu0 0.0
      %561 = vmatpush2.msra.mxu0 0.0
      %562 = vmatprep.subr.mxu0 0.0
      %563 = vmatpush2.msra.mxu0 0.0
      %564 = vmatprep.subr.mxu0 0.0
      %565 = vmatpush2.msra.mxu0 0.0
      %566 = vmatprep.mubr.f32.mxu0 0.0
      %567 = vmatmul.mubr.f32.gmra.mxu0 %v414
      %v568 = vpop.f32.mrf.mxu0
      %v569 = vadd.f32 %v485, %v568
      %v570 = vpop.f32.mrf.mxu0
      %v571 = vadd.f32 %v489, %v570
      %572 = vmatprep.mubr.f32.mxu0 0.0
      %573 = vmatmul.mubr.f32.gmra.mxu0 %v415
      %v574 = vpop.f32.mrf.mxu0
      %v575 = vadd.f32 %v485, %v574
      %v576 = vpop.f32.mrf.mxu0
      %v577 = vadd.f32 %v489, %v576
      %578 = vdwg.mxu0
      %579 = vmatprep.subr.mxu0 %v479
      %580 = vmatpush1.msra.mxu0 %v478
      %581 = vmatprep.subr.mxu0 %v475
      %582 = vmatpush1.msra.mxu0 %v474
      %583 = vmatprep.subr.mxu0 %v471
      %584 = vmatpush1.msra.mxu0 %v470
      %585 = vmatprep.subr.mxu0 %v467
      %586 = vmatpush1.msra.mxu0 %v466
      %587 = vmatprep.subr.mxu0 %v463
      %588 = vmatpush1.msra.mxu0 %v462
      %589 = vmatprep.subr.mxu0 %v459
      %590 = vmatpush1.msra.mxu0 %v458
      %591 = vmatprep.subr.mxu0 %v455
      %592 = vmatpush1.msra.mxu0 %v454
      %593 = vmatprep.subr.mxu0 %v451
      %594 = vmatpush1.msra.mxu0 %v450
      %595 = vmatprep.subr.mxu0 %v447
      %596 = vmatpush1.msra.mxu0 %v446
      %597 = vmatprep.subr.mxu0 %v443
      %598 = vmatpush1.msra.mxu0 %v442
      %599 = vmatprep.subr.mxu0 %v439
      %600 = vmatpush1.msra.mxu0 %v438
      %601 = vmatprep.subr.mxu0 %v435
      %602 = vmatpush1.msra.mxu0 %v434
      %603 = vmatprep.subr.mxu0 %v431
      %604 = vmatpush1.msra.mxu0 %v430
      %605 = vmatprep.subr.mxu0 %v427
      %606 = vmatpush1.msra.mxu0 %v426
      %607 = vmatprep.subr.mxu0 %v423
      %608 = vmatpush1.msra.mxu0 %v422
      %609 = vmatprep.subr.mxu0 %v419
      %610 = vmatpush1.msra.mxu0 %v418
      %611 = vmatprep.subr.mxu0 0.0
      %612 = vmatpush2.msra.mxu0 0.0
      %613 = vmatprep.subr.mxu0 0.0
      %614 = vmatpush2.msra.mxu0 0.0
      %615 = vmatprep.subr.mxu0 0.0
      %616 = vmatpush2.msra.mxu0 0.0
      %617 = vmatprep.subr.mxu0 0.0
      %618 = vmatpush2.msra.mxu0 0.0
      %619 = vmatprep.subr.mxu0 0.0
      %620 = vmatpush2.msra.mxu0 0.0
      %621 = vmatprep.subr.mxu0 0.0
      %622 = vmatpush2.msra.mxu0 0.0
      %623 = vmatprep.subr.mxu0 0.0
      %624 = vmatpush2.msra.mxu0 0.0
      %625 = vmatprep.subr.mxu0 0.0
      %626 = vmatpush2.msra.mxu0 0.0
      %627 = vmatprep.subr.mxu0 0.0
      %628 = vmatpush2.msra.mxu0 0.0
      %629 = vmatprep.subr.mxu0 0.0
      %630 = vmatpush2.msra.mxu0 0.0
      %631 = vmatprep.subr.mxu0 0.0
      %632 = vmatpush2.msra.mxu0 0.0
      %633 = vmatprep.subr.mxu0 0.0
      %634 = vmatpush2.msra.mxu0 0.0
      %635 = vmatprep.subr.mxu0 0.0
      %636 = vmatpush2.msra.mxu0 0.0
      %637 = vmatprep.subr.mxu0 0.0
      %638 = vmatpush2.msra.mxu0 0.0
      %639 = vmatprep.subr.mxu0 0.0
      %640 = vmatpush2.msra.mxu0 0.0
      %641 = vmatprep.subr.mxu0 0.0
      %642 = vmatpush2.msra.mxu0 0.0
      %643 = vmatprep.mubr.f32.mxu0 0.0
      %644 = vmatmul.mubr.f32.gmra.mxu0 %v414
      %v645 = vpop.f32.mrf.mxu0
      %v646 = vadd.f32 %v493, %v645
      %v647 = vpop.f32.mrf.mxu0
      %v648 = vadd.f32 %v497, %v647
      %649 = vmatprep.mubr.f32.mxu0 0.0
      %650 = vmatmul.mubr.f32.gmra.mxu0 %v415
      %v651 = vpop.f32.mrf.mxu0
      %v652 = vadd.f32 %v493, %v651
      %v653 = vpop.f32.mrf.mxu0
      %v654 = vadd.f32 %v497, %v653
      %655 = vdwg.mxu0
      %v656 = vxor.u32 %v569, 2147483648
      %v657 = vxor.u32 %v571, 2147483648
      %v658 = vxor.u32 %v646, 2147483648
      %v659 = vxor.u32 %v648, 2147483648
      %v660 = vxor.u32 %v575, 2147483648
      %v661 = vxor.u32 %v577, 2147483648
      %v662 = vxor.u32 %v652, 2147483648
      %v663 = vxor.u32 %v654, 2147483648
      %v664 = vmul.f32 %v656, 1.442695
      %v665 = vpow.pop %v664
      %v666 = vmul.f32 %v657, 1.442695
      %v667 = vpow.pop %v666
      %v668 = vmul.f32 %v658, 1.442695
      %v669 = vpow.pop %v668
      %v670 = vmul.f32 %v659, 1.442695
      %v671 = vpow.pop %v670
      %v672 = vmul.f32 %v660, 1.442695
      %v673 = vpow.pop %v672
      %v674 = vmul.f32 %v661, 1.442695
      %v675 = vpow.pop %v674
      %v676 = vmul.f32 %v662, 1.442695
      %v677 = vpow.pop %v676
      %v678 = vmul.f32 %v663, 1.442695
      %v679 = vpow.pop %v678
      %v680 = vadd.f32 %v665, 1.0
      %v681 = vadd.f32 %v667, 1.0
      %v682 = vadd.f32 %v669, 1.0
      %v683 = vadd.f32 %v671, 1.0
      %v684 = vadd.f32 %v673, 1.0
      %v685 = vadd.f32 %v675, 1.0
      %v686 = vadd.f32 %v677, 1.0
      %v687 = vadd.f32 %v679, 1.0
      %v688 = vrcp.pop %v680
      %v689 = vmul.f32 1.0, %v688
      %v690 = vrcp.pop %v681
      %v691 = vmul.f32 1.0, %v690
      %v692 = vrcp.pop %v682
      %v693 = vmul.f32 1.0, %v692
      %v694 = vrcp.pop %v683
      %v695 = vmul.f32 1.0, %v694
      %v696 = vrcp.pop %v684
      %v697 = vmul.f32 1.0, %v696
      %v698 = vrcp.pop %v685
      %v699 = vmul.f32 1.0, %v698
      %v700 = vrcp.pop %v686
      %v701 = vmul.f32 1.0, %v700
      %v702 = vrcp.pop %v687
      %v703 = vmul.f32 1.0, %v702
      %v704 = vmul.f32 %v569, %v689
      %v705 = vmul.f32 %v571, %v691
      %v706 = vmul.f32 %v646, %v693
      %v707 = vmul.f32 %v648, %v695
      %v708 = vmul.f32 %v575, %v697
      %v709 = vmul.f32 %v577, %v699
      %v710 = vmul.f32 %v652, %v701
      %v711 = vmul.f32 %v654, %v703
      %712 = vrot.lane.b32.xlu0 %v704, 32
      %v713 = vpop.permute.xlu0 %712
      %714 = vrot.lane.b32.xlu0 %v708, 32
      %v715 = vpop.permute.xlu0 %714
      %716 = vrot.lane.b32.xlu0 %v705, 32
      %v717 = vpop.permute.xlu0 %716
      %718 = vrot.lane.b32.xlu0 %v709, 32
      %v719 = vpop.permute.xlu0 %718
      %720 = vrot.lane.b32.xlu0 %v706, 32
      %v721 = vpop.permute.xlu0 %720
      %722 = vrot.lane.b32.xlu0 %v710, 32
      %v723 = vpop.permute.xlu0 %722
      %724 = vrot.lane.b32.xlu0 %v707, 32
      %v725 = vpop.permute.xlu0 %724
      %726 = vrot.lane.b32.xlu0 %v711, 32
      %v727 = vpop.permute.xlu0 %726
      %v728 = vlaneseq
      %v729 = vand.u32 %v728, 127
      %vm730 = vcmp.lt.s32.totalorder %v729, 32
      %v731 = vsel %vm730, %v721, %v725
      %v732 = vsel %vm730, %v723, %v727
      %v733 = vsel %vm730, %v717, %v721
      %v734 = vsel %vm730, %v719, %v723
      %v735 = vsel %vm730, %v713, %v717
      %v736 = vsel %vm730, %v715, %v719
      %v737 = vsel %vm730, %v725, %v713
      %v738 = vsel %vm730, %v727, %v715
      %739 = vrot.lane.b32.xlu0 %v704, 96
      %v740 = vpop.permute.xlu0 %739
      %741 = vrot.lane.b32.xlu0 %v708, 96
      %v742 = vpop.permute.xlu0 %741
      %743 = vrot.lane.b32.xlu0 %v705, 96
      %v744 = vpop.permute.xlu0 %743
      %745 = vrot.lane.b32.xlu0 %v709, 96
      %v746 = vpop.permute.xlu0 %745
      %747 = vrot.lane.b32.xlu0 %v706, 96
      %v748 = vpop.permute.xlu0 %747
      %749 = vrot.lane.b32.xlu0 %v710, 96
      %v750 = vpop.permute.xlu0 %749
      %751 = vrot.lane.b32.xlu0 %v707, 96
      %v752 = vpop.permute.xlu0 %751
      %753 = vrot.lane.b32.xlu0 %v711, 96
      %v754 = vpop.permute.xlu0 %753
      %vm755 = vcmp.lt.s32.totalorder %v729, 96
      %v756 = vsel %vm755, %v748, %v752
      %v757 = vsel %vm755, %v750, %v754
      %v758 = vsel %vm755, %v744, %v748
      %v759 = vsel %vm755, %v746, %v750
      %v760 = vsel %vm755, %v740, %v744
      %v761 = vsel %vm755, %v742, %v746
      %v762 = vsel %vm755, %v752, %v740
      %v763 = vsel %vm755, %v754, %v742
      %v764 = vld [vmem:[%s3] sm:$0xf]
      %v766 = vlaneseq
      %v767 = vshrl.u32 %v766, 7
      %v768 = vsub.s32 0, %v767
      %v769 = vrot.slane %v764, %v768
      %v770 = vlaneseq
      %v771 = vshrl.u32 %v770, 7
      %v772 = vsub.s32 1, %v771
      %v773 = vrot.slane %v764, %v772
      %v774 = vlaneseq
      %v775 = vshrl.u32 %v774, 7
      %v776 = vsub.s32 2, %v775
      %v777 = vrot.slane %v764, %v776
      %v778 = vlaneseq
      %v779 = vshrl.u32 %v778, 7
      %v780 = vsub.s32 3, %v779
      %v781 = vrot.slane %v764, %v780
      %v786 = vmul.f32 %v737, %v769
      %v787 = vmul.f32 %v735, %v773
      %v788 = vmul.f32 %v733, %v777
      %v789 = vmul.f32 %v731, %v781
      %v790 = vmul.f32 %v738, %v769
      %v791 = vmul.f32 %v736, %v773
      %v792 = vmul.f32 %v734, %v777
      %v793 = vmul.f32 %v732, %v781
      %s794 = scalar_lea.vmem %s3, 4
      %v795 = vld [vmem:[%s794] sm:$0xf]
      %v797 = vlaneseq
      %v798 = vshrl.u32 %v797, 7
      %v799 = vsub.s32 0, %v798
      %v800 = vrot.slane %v795, %v799
      %v801 = vlaneseq
      %v802 = vshrl.u32 %v801, 7
      %v803 = vsub.s32 1, %v802
      %v804 = vrot.slane %v795, %v803
      %v805 = vlaneseq
      %v806 = vshrl.u32 %v805, 7
      %v807 = vsub.s32 2, %v806
      %v808 = vrot.slane %v795, %v807
      %v809 = vlaneseq
      %v810 = vshrl.u32 %v809, 7
      %v811 = vsub.s32 3, %v810
      %v812 = vrot.slane %v795, %v811
      %v817 = vmul.f32 %v704, %v800
      %v818 = vmul.f32 %v705, %v804
      %v819 = vmul.f32 %v706, %v808
      %v820 = vmul.f32 %v707, %v812
      %v821 = vmul.f32 %v708, %v800
      %v822 = vmul.f32 %v709, %v804
      %v823 = vmul.f32 %v710, %v808
      %v824 = vmul.f32 %v711, %v812
      %v825 = vadd.f32 %v786, %v817
      %v826 = vadd.f32 %v787, %v818
      %v827 = vadd.f32 %v788, %v819
      %v828 = vadd.f32 %v789, %v820
      %v829 = vadd.f32 %v790, %v821
      %v830 = vadd.f32 %v791, %v822
      %v831 = vadd.f32 %v792, %v823
      %v832 = vadd.f32 %v793, %v824
      %s833 = scalar_lea.vmem %s3, 8
      %v834 = vld [vmem:[%s833] sm:$0xf]
      %v836 = vlaneseq
      %v837 = vshrl.u32 %v836, 7
      %v838 = vsub.s32 0, %v837
      %v839 = vrot.slane %v834, %v838
      %v840 = vlaneseq
      %v841 = vshrl.u32 %v840, 7
      %v842 = vsub.s32 1, %v841
      %v843 = vrot.slane %v834, %v842
      %v844 = vlaneseq
      %v845 = vshrl.u32 %v844, 7
      %v846 = vsub.s32 2, %v845
      %v847 = vrot.slane %v834, %v846
      %v848 = vlaneseq
      %v849 = vshrl.u32 %v848, 7
      %v850 = vsub.s32 3, %v849
      %v851 = vrot.slane %v834, %v850
      %v856 = vmul.f32 %v760, %v839
      %v857 = vmul.f32 %v758, %v843
      %v858 = vmul.f32 %v756, %v847
      %v859 = vmul.f32 %v762, %v851
      %v860 = vmul.f32 %v761, %v839
      %v861 = vmul.f32 %v759, %v843
      %v862 = vmul.f32 %v757, %v847
      %v863 = vmul.f32 %v763, %v851
      %v864 = vadd.f32 %v825, %v856
      %v865 = vadd.f32 %v826, %v857
      %v866 = vadd.f32 %v827, %v858
      %v867 = vadd.f32 %v828, %v859
      %v868 = vadd.f32 %v829, %v860
      %v869 = vadd.f32 %v830, %v861
      %v870 = vadd.f32 %v831, %v862
      %v871 = vadd.f32 %v832, %v863
      %v872 = vld [vmem:[%s4] sm:$0xff]
      %v873 = vld [vmem:[%s4 + $0x8] sm:$0xff]
      %s874 = scalar_lea.vmem %s3, 12
      %v875 = vld [vmem:[%s874] sm:$0xf]
      %v877 = vlaneseq
      %v878 = vshrl.u32 %v877, 7
      %v879 = vsub.s32 0, %v878
      %v880 = vrot.slane %v875, %v879
      %v881 = vlaneseq
      %v882 = vshrl.u32 %v881, 7
      %v883 = vsub.s32 1, %v882
      %v884 = vrot.slane %v875, %v883
      %v885 = vlaneseq
      %v886 = vshrl.u32 %v885, 7
      %v887 = vsub.s32 2, %v886
      %v888 = vrot.slane %v875, %v887
      %v889 = vlaneseq
      %v890 = vshrl.u32 %v889, 7
      %v891 = vsub.s32 3, %v890
      %v892 = vrot.slane %v875, %v891
      %v897 = vmul.f32 %v737, %v880
      %v898 = vmul.f32 %v735, %v884
      %v899 = vmul.f32 %v733, %v888
      %v900 = vmul.f32 %v731, %v892
      %v901 = vmul.f32 %v738, %v880
      %v902 = vmul.f32 %v736, %v884
      %v903 = vmul.f32 %v734, %v888
      %v904 = vmul.f32 %v732, %v892
      %s905 = scalar_lea.vmem %s3, 16
      %v906 = vld [vmem:[%s905] sm:$0xf]
      %v908 = vlaneseq
      %v909 = vshrl.u32 %v908, 7
      %v910 = vsub.s32 0, %v909
      %v911 = vrot.slane %v906, %v910
      %v912 = vlaneseq
      %v913 = vshrl.u32 %v912, 7
      %v914 = vsub.s32 1, %v913
      %v915 = vrot.slane %v906, %v914
      %v916 = vlaneseq
      %v917 = vshrl.u32 %v916, 7
      %v918 = vsub.s32 2, %v917
      %v919 = vrot.slane %v906, %v918
      %v920 = vlaneseq
      %v921 = vshrl.u32 %v920, 7
      %v922 = vsub.s32 3, %v921
      %v923 = vrot.slane %v906, %v922
      %v928 = vmul.f32 %v704, %v911
      %v929 = vmul.f32 %v705, %v915
      %v930 = vmul.f32 %v706, %v919
      %v931 = vmul.f32 %v707, %v923
      %v932 = vmul.f32 %v708, %v911
      %v933 = vmul.f32 %v709, %v915
      %v934 = vmul.f32 %v710, %v919
      %v935 = vmul.f32 %v711, %v923
      %v936 = vadd.f32 %v897, %v928
      %v937 = vadd.f32 %v898, %v929
      %v938 = vadd.f32 %v899, %v930
      %v939 = vadd.f32 %v900, %v931
      %v940 = vadd.f32 %v901, %v932
      %v941 = vadd.f32 %v902, %v933
      %v942 = vadd.f32 %v903, %v934
      %v943 = vadd.f32 %v904, %v935
      %s944 = scalar_lea.vmem %s3, 20
      %v945 = vld [vmem:[%s944] sm:$0xf]
      %v947 = vlaneseq
      %v948 = vshrl.u32 %v947, 7
      %v949 = vsub.s32 0, %v948
      %v950 = vrot.slane %v945, %v949
      %v951 = vlaneseq
      %v952 = vshrl.u32 %v951, 7
      %v953 = vsub.s32 1, %v952
      %v954 = vrot.slane %v945, %v953
      %v955 = vlaneseq
      %v956 = vshrl.u32 %v955, 7
      %v957 = vsub.s32 2, %v956
      %v958 = vrot.slane %v945, %v957
      %v959 = vlaneseq
      %v960 = vshrl.u32 %v959, 7
      %v961 = vsub.s32 3, %v960
      %v962 = vrot.slane %v945, %v961
      %v967 = vmul.f32 %v760, %v950
      %v968 = vmul.f32 %v758, %v954
      %v969 = vmul.f32 %v756, %v958
      %v970 = vmul.f32 %v762, %v962
      %v971 = vmul.f32 %v761, %v950
      %v972 = vmul.f32 %v759, %v954
      %v973 = vmul.f32 %v757, %v958
      %v974 = vmul.f32 %v763, %v962
      %v975 = vadd.f32 %v936, %v967
      %v976 = vadd.f32 %v937, %v968
      %v977 = vadd.f32 %v938, %v969
      %v978 = vadd.f32 %v939, %v970
      %v979 = vadd.f32 %v940, %v971
      %v980 = vadd.f32 %v941, %v972
      %v981 = vadd.f32 %v942, %v973
      %v982 = vadd.f32 %v943, %v974
      %s983 = scalar_lea.vmem %s4, 16
      %v984 = vld [vmem:[%s983] sm:$0xff]
      %v985 = vld [vmem:[%s983 + $0x8] sm:$0xff]
      %vm986 = vcmask 130048
      %v988 = vsel %vm986, %v984, 0
      %v991 = vsel %vm986, %v985, 0
      %993 = vmatprep.subr.mxu0 0.0
      %994 = vmatpush1.msra.mxu0 0.0
      %995 = vmatprep.subr.mxu0 0.0
      %996 = vmatpush1.msra.mxu0 0.0
      %997 = vmatprep.subr.mxu0 0.0
      %998 = vmatpush1.msra.mxu0 0.0
      %999 = vmatprep.subr.mxu0 0.0
      %1000 = vmatpush1.msra.mxu0 0.0
      %1001 = vmatprep.subr.mxu0 0.0
      %1002 = vmatpush1.msra.mxu0 0.0
      %1003 = vmatprep.subr.mxu0 0.0
      %1004 = vmatpush1.msra.mxu0 0.0
      %1005 = vmatprep.subr.mxu0 0.0
      %1006 = vmatpush1.msra.mxu0 0.0
      %1007 = vmatprep.subr.mxu0 0.0
      %1008 = vmatpush1.msra.mxu0 0.0
      %1009 = vmatprep.subr.mxu0 0.0
      %1010 = vmatpush1.msra.mxu0 0.0
      %1011 = vmatprep.subr.mxu0 0.0
      %1012 = vmatpush1.msra.mxu0 0.0
      %1013 = vmatprep.subr.mxu0 0.0
      %1014 = vmatpush1.msra.mxu0 0.0
      %1015 = vmatprep.subr.mxu0 0.0
      %1016 = vmatpush1.msra.mxu0 0.0
      %1017 = vmatprep.subr.mxu0 0.0
      %1018 = vmatpush1.msra.mxu0 0.0
      %1019 = vmatprep.subr.mxu0 0.0
      %1020 = vmatpush1.msra.mxu0 0.0
      %1021 = vmatprep.subr.mxu0 %v980
      %1022 = vmatpush1.msra.mxu0 %v979
      %1023 = vmatprep.subr.mxu0 %v976
      %1024 = vmatpush1.msra.mxu0 %v975
      %1025 = vmatprep.subr.mxu0 0.0
      %1026 = vmatpush2.msra.mxu0 0.0
      %1027 = vmatprep.subr.mxu0 0.0
      %1028 = vmatpush2.msra.mxu0 0.0
      %1029 = vmatprep.subr.mxu0 0.0
      %1030 = vmatpush2.msra.mxu0 0.0
      %1031 = vmatprep.subr.mxu0 0.0
      %1032 = vmatpush2.msra.mxu0 0.0
      %1033 = vmatprep.subr.mxu0 0.0
      %1034 = vmatpush2.msra.mxu0 0.0
      %1035 = vmatprep.subr.mxu0 0.0
      %1036 = vmatpush2.msra.mxu0 0.0
      %1037 = vmatprep.subr.mxu0 0.0
      %1038 = vmatpush2.msra.mxu0 0.0
      %1039 = vmatprep.subr.mxu0 0.0
      %1040 = vmatpush2.msra.mxu0 0.0
      %1041 = vmatprep.subr.mxu0 0.0
      %1042 = vmatpush2.msra.mxu0 0.0
      %1043 = vmatprep.subr.mxu0 0.0
      %1044 = vmatpush2.msra.mxu0 0.0
      %1045 = vmatprep.subr.mxu0 0.0
      %1046 = vmatpush2.msra.mxu0 0.0
      %1047 = vmatprep.subr.mxu0 0.0
      %1048 = vmatpush2.msra.mxu0 0.0
      %1049 = vmatprep.subr.mxu0 0.0
      %1050 = vmatpush2.msra.mxu0 0.0
      %1051 = vmatprep.subr.mxu0 0.0
      %1052 = vmatpush2.msra.mxu0 0.0
      %1053 = vmatprep.subr.mxu0 0.0
      %1054 = vmatpush2.msra.mxu0 0.0
      %1055 = vmatprep.subr.mxu0 0.0
      %1056 = vmatpush2.msra.mxu0 0.0
      %1057 = vmatprep.mubr.f32.mxu0 0.0
      %1058 = vmatmul.mubr.f32.gmra.mxu0 %v988
      %v1059 = vpop.f32.mrf.mxu0
      %v1060 = vadd.f32 0.0, %v1059
      %v1061 = vpop.f32.mrf.mxu0
      %v1062 = vadd.f32 0.0, %v1061
      %1063 = vmatprep.mubr.f32.mxu0 0.0
      %1064 = vmatmul.mubr.f32.gmra.mxu0 %v991
      %v1065 = vpop.f32.mrf.mxu0
      %v1066 = vadd.f32 0.0, %v1065
      %v1067 = vpop.f32.mrf.mxu0
      %v1068 = vadd.f32 0.0, %v1067
      %1069 = vdwg.mxu0
      %1070 = vmatprep.subr.mxu0 0.0
      %1071 = vmatpush1.msra.mxu0 0.0
      %1072 = vmatprep.subr.mxu0 0.0
      %1073 = vmatpush1.msra.mxu0 0.0
      %1074 = vmatprep.subr.mxu0 0.0
      %1075 = vmatpush1.msra.mxu0 0.0
      %1076 = vmatprep.subr.mxu0 0.0
      %1077 = vmatpush1.msra.mxu0 0.0
      %1078 = vmatprep.subr.mxu0 0.0
      %1079 = vmatpush1.msra.mxu0 0.0
      %1080 = vmatprep.subr.mxu0 0.0
      %1081 = vmatpush1.msra.mxu0 0.0
      %1082 = vmatprep.subr.mxu0 0.0
      %1083 = vmatpush1.msra.mxu0 0.0
      %1084 = vmatprep.subr.mxu0 0.0
      %1085 = vmatpush1.msra.mxu0 0.0
      %1086 = vmatprep.subr.mxu0 0.0
      %1087 = vmatpush1.msra.mxu0 0.0
      %1088 = vmatprep.subr.mxu0 0.0
      %1089 = vmatpush1.msra.mxu0 0.0
      %1090 = vmatprep.subr.mxu0 0.0
      %1091 = vmatpush1.msra.mxu0 0.0
      %1092 = vmatprep.subr.mxu0 0.0
      %1093 = vmatpush1.msra.mxu0 0.0
      %1094 = vmatprep.subr.mxu0 0.0
      %1095 = vmatpush1.msra.mxu0 0.0
      %1096 = vmatprep.subr.mxu0 0.0
      %1097 = vmatpush1.msra.mxu0 0.0
      %1098 = vmatprep.subr.mxu0 %v982
      %1099 = vmatpush1.msra.mxu0 %v981
      %1100 = vmatprep.subr.mxu0 %v978
      %1101 = vmatpush1.msra.mxu0 %v977
      %1102 = vmatprep.subr.mxu0 0.0
      %1103 = vmatpush2.msra.mxu0 0.0
      %1104 = vmatprep.subr.mxu0 0.0
      %1105 = vmatpush2.msra.mxu0 0.0
      %1106 = vmatprep.subr.mxu0 0.0
      %1107 = vmatpush2.msra.mxu0 0.0
      %1108 = vmatprep.subr.mxu0 0.0
      %1109 = vmatpush2.msra.mxu0 0.0
      %1110 = vmatprep.subr.mxu0 0.0
      %1111 = vmatpush2.msra.mxu0 0.0
      %1112 = vmatprep.subr.mxu0 0.0
      %1113 = vmatpush2.msra.mxu0 0.0
      %1114 = vmatprep.subr.mxu0 0.0
      %1115 = vmatpush2.msra.mxu0 0.0
      %1116 = vmatprep.subr.mxu0 0.0
      %1117 = vmatpush2.msra.mxu0 0.0
      %1118 = vmatprep.subr.mxu0 0.0
      %1119 = vmatpush2.msra.mxu0 0.0
      %1120 = vmatprep.subr.mxu0 0.0
      %1121 = vmatpush2.msra.mxu0 0.0
      %1122 = vmatprep.subr.mxu0 0.0
      %1123 = vmatpush2.msra.mxu0 0.0
      %1124 = vmatprep.subr.mxu0 0.0
      %1125 = vmatpush2.msra.mxu0 0.0
      %1126 = vmatprep.subr.mxu0 0.0
      %1127 = vmatpush2.msra.mxu0 0.0
      %1128 = vmatprep.subr.mxu0 0.0
      %1129 = vmatpush2.msra.mxu0 0.0
      %1130 = vmatprep.subr.mxu0 0.0
      %1131 = vmatpush2.msra.mxu0 0.0
      %1132 = vmatprep.subr.mxu0 0.0
      %1133 = vmatpush2.msra.mxu0 0.0
      %1134 = vmatprep.mubr.f32.mxu0 0.0
      %1135 = vmatmul.mubr.f32.gmra.mxu0 %v988
      %v1136 = vpop.f32.mrf.mxu0
      %v1137 = vadd.f32 0.0, %v1136
      %v1138 = vpop.f32.mrf.mxu0
      %v1139 = vadd.f32 0.0, %v1138
      %1140 = vmatprep.mubr.f32.mxu0 0.0
      %1141 = vmatmul.mubr.f32.gmra.mxu0 %v991
      %v1142 = vpop.f32.mrf.mxu0
      %v1143 = vadd.f32 0.0, %v1142
      %v1144 = vpop.f32.mrf.mxu0
      %v1145 = vadd.f32 0.0, %v1144
      %1146 = vdwg.mxu0
      %v1148 = vsel %vm986, %v872, 0
      %v1151 = vsel %vm986, %v873, 0
      %1153 = vmatprep.subr.mxu0 0.0
      %1154 = vmatpush1.msra.mxu0 0.0
      %1155 = vmatprep.subr.mxu0 0.0
      %1156 = vmatpush1.msra.mxu0 0.0
      %1157 = vmatprep.subr.mxu0 0.0
      %1158 = vmatpush1.msra.mxu0 0.0
      %1159 = vmatprep.subr.mxu0 0.0
      %1160 = vmatpush1.msra.mxu0 0.0
      %1161 = vmatprep.subr.mxu0 0.0
      %1162 = vmatpush1.msra.mxu0 0.0
      %1163 = vmatprep.subr.mxu0 0.0
      %1164 = vmatpush1.msra.mxu0 0.0
      %1165 = vmatprep.subr.mxu0 0.0
      %1166 = vmatpush1.msra.mxu0 0.0
      %1167 = vmatprep.subr.mxu0 0.0
      %1168 = vmatpush1.msra.mxu0 0.0
      %1169 = vmatprep.subr.mxu0 0.0
      %1170 = vmatpush1.msra.mxu0 0.0
      %1171 = vmatprep.subr.mxu0 0.0
      %1172 = vmatpush1.msra.mxu0 0.0
      %1173 = vmatprep.subr.mxu0 0.0
      %1174 = vmatpush1.msra.mxu0 0.0
      %1175 = vmatprep.subr.mxu0 0.0
      %1176 = vmatpush1.msra.mxu0 0.0
      %1177 = vmatprep.subr.mxu0 0.0
      %1178 = vmatpush1.msra.mxu0 0.0
      %1179 = vmatprep.subr.mxu0 0.0
      %1180 = vmatpush1.msra.mxu0 0.0
      %1181 = vmatprep.subr.mxu0 %v869
      %1182 = vmatpush1.msra.mxu0 %v868
      %1183 = vmatprep.subr.mxu0 %v865
      %1184 = vmatpush1.msra.mxu0 %v864
      %1185 = vmatprep.subr.mxu0 0.0
      %1186 = vmatpush2.msra.mxu0 0.0
      %1187 = vmatprep.subr.mxu0 0.0
      %1188 = vmatpush2.msra.mxu0 0.0
      %1189 = vmatprep.subr.mxu0 0.0
      %1190 = vmatpush2.msra.mxu0 0.0
      %1191 = vmatprep.subr.mxu0 0.0
      %1192 = vmatpush2.msra.mxu0 0.0
      %1193 = vmatprep.subr.mxu0 0.0
      %1194 = vmatpush2.msra.mxu0 0.0
      %1195 = vmatprep.subr.mxu0 0.0
      %1196 = vmatpush2.msra.mxu0 0.0
      %1197 = vmatprep.subr.mxu0 0.0
      %1198 = vmatpush2.msra.mxu0 0.0
      %1199 = vmatprep.subr.mxu0 0.0
      %1200 = vmatpush2.msra.mxu0 0.0
      %1201 = vmatprep.subr.mxu0 0.0
      %1202 = vmatpush2.msra.mxu0 0.0
      %1203 = vmatprep.subr.mxu0 0.0
      %1204 = vmatpush2.msra.mxu0 0.0
      %1205 = vmatprep.subr.mxu0 0.0
      %1206 = vmatpush2.msra.mxu0 0.0
      %1207 = vmatprep.subr.mxu0 0.0
      %1208 = vmatpush2.msra.mxu0 0.0
      %1209 = vmatprep.subr.mxu0 0.0
      %1210 = vmatpush2.msra.mxu0 0.0
      %1211 = vmatprep.subr.mxu0 0.0
      %1212 = vmatpush2.msra.mxu0 0.0
      %1213 = vmatprep.subr.mxu0 0.0
      %1214 = vmatpush2.msra.mxu0 0.0
      %1215 = vmatprep.subr.mxu0 0.0
      %1216 = vmatpush2.msra.mxu0 0.0
      %1217 = vmatprep.mubr.f32.mxu0 0.0
      %1218 = vmatmul.mubr.f32.gmra.mxu0 %v1148
      %v1219 = vpop.f32.mrf.mxu0
      %v1220 = vadd.f32 %v1060, %v1219
      %v1221 = vpop.f32.mrf.mxu0
      %v1222 = vadd.f32 %v1062, %v1221
      %1223 = vmatprep.mubr.f32.mxu0 0.0
      %1224 = vmatmul.mubr.f32.gmra.mxu0 %v1151
      %v1225 = vpop.f32.mrf.mxu0
      %v1226 = vadd.f32 %v1066, %v1225
      %v1227 = vpop.f32.mrf.mxu0
      %v1228 = vadd.f32 %v1068, %v1227
      %1229 = vdwg.mxu0
      %1230 = vmatprep.subr.mxu0 0.0
      %1231 = vmatpush1.msra.mxu0 0.0
      %1232 = vmatprep.subr.mxu0 0.0
      %1233 = vmatpush1.msra.mxu0 0.0
      %1234 = vmatprep.subr.mxu0 0.0
      %1235 = vmatpush1.msra.mxu0 0.0
      %1236 = vmatprep.subr.mxu0 0.0
      %1237 = vmatpush1.msra.mxu0 0.0
      %1238 = vmatprep.subr.mxu0 0.0
      %1239 = vmatpush1.msra.mxu0 0.0
      %1240 = vmatprep.subr.mxu0 0.0
      %1241 = vmatpush1.msra.mxu0 0.0
      %1242 = vmatprep.subr.mxu0 0.0
      %1243 = vmatpush1.msra.mxu0 0.0
      %1244 = vmatprep.subr.mxu0 0.0
      %1245 = vmatpush1.msra.mxu0 0.0
      %1246 = vmatprep.subr.mxu0 0.0
      %1247 = vmatpush1.msra.mxu0 0.0
      %1248 = vmatprep.subr.mxu0 0.0
      %1249 = vmatpush1.msra.mxu0 0.0
      %1250 = vmatprep.subr.mxu0 0.0
      %1251 = vmatpush1.msra.mxu0 0.0
      %1252 = vmatprep.subr.mxu0 0.0
      %1253 = vmatpush1.msra.mxu0 0.0
      %1254 = vmatprep.subr.mxu0 0.0
      %1255 = vmatpush1.msra.mxu0 0.0
      %1256 = vmatprep.subr.mxu0 0.0
      %1257 = vmatpush1.msra.mxu0 0.0
      %1258 = vmatprep.subr.mxu0 %v871
      %1259 = vmatpush1.msra.mxu0 %v870
      %1260 = vmatprep.subr.mxu0 %v867
      %1261 = vmatpush1.msra.mxu0 %v866
      %1262 = vmatprep.subr.mxu0 0.0
      %1263 = vmatpush2.msra.mxu0 0.0
      %1264 = vmatprep.subr.mxu0 0.0
      %1265 = vmatpush2.msra.mxu0 0.0
      %1266 = vmatprep.subr.mxu0 0.0
      %1267 = vmatpush2.msra.mxu0 0.0
      %1268 = vmatprep.subr.mxu0 0.0
      %1269 = vmatpush2.msra.mxu0 0.0
      %1270 = vmatprep.subr.mxu0 0.0
      %1271 = vmatpush2.msra.mxu0 0.0
      %1272 = vmatprep.subr.mxu0 0.0
      %1273 = vmatpush2.msra.mxu0 0.0
      %1274 = vmatprep.subr.mxu0 0.0
      %1275 = vmatpush2.msra.mxu0 0.0
      %1276 = vmatprep.subr.mxu0 0.0
      %1277 = vmatpush2.msra.mxu0 0.0
      %1278 = vmatprep.subr.mxu0 0.0
      %1279 = vmatpush2.msra.mxu0 0.0
      %1280 = vmatprep.subr.mxu0 0.0
      %1281 = vmatpush2.msra.mxu0 0.0
      %1282 = vmatprep.subr.mxu0 0.0
      %1283 = vmatpush2.msra.mxu0 0.0
      %1284 = vmatprep.subr.mxu0 0.0
      %1285 = vmatpush2.msra.mxu0 0.0
      %1286 = vmatprep.subr.mxu0 0.0
      %1287 = vmatpush2.msra.mxu0 0.0
      %1288 = vmatprep.subr.mxu0 0.0
      %1289 = vmatpush2.msra.mxu0 0.0
      %1290 = vmatprep.subr.mxu0 0.0
      %1291 = vmatpush2.msra.mxu0 0.0
      %1292 = vmatprep.subr.mxu0 0.0
      %1293 = vmatpush2.msra.mxu0 0.0
      %1294 = vmatprep.mubr.f32.mxu0 0.0
      %1295 = vmatmul.mubr.f32.gmra.mxu0 %v1148
      %v1296 = vpop.f32.mrf.mxu0
      %v1297 = vadd.f32 %v1137, %v1296
      %v1298 = vpop.f32.mrf.mxu0
      %v1299 = vadd.f32 %v1139, %v1298
      %1300 = vmatprep.mubr.f32.mxu0 0.0
      %1301 = vmatmul.mubr.f32.gmra.mxu0 %v1151
      %v1302 = vpop.f32.mrf.mxu0
      %v1303 = vadd.f32 %v1143, %v1302
      %v1304 = vpop.f32.mrf.mxu0
      %v1305 = vadd.f32 %v1145, %v1304
      %1306 = vdwg.mxu0
      %s1307 = scalar_lea.vmem %s3, 24
      %v1308 = vld [vmem:[%s1307] sm:$0xf]
      %v1310 = vlaneseq
      %v1311 = vshrl.u32 %v1310, 7
      %v1312 = vsub.s32 0, %v1311
      %v1313 = vrot.slane %v1308, %v1312
      %v1314 = vlaneseq
      %v1315 = vshrl.u32 %v1314, 7
      %v1316 = vsub.s32 1, %v1315
      %v1317 = vrot.slane %v1308, %v1316
      %v1318 = vlaneseq
      %v1319 = vshrl.u32 %v1318, 7
      %v1320 = vsub.s32 2, %v1319
      %v1321 = vrot.slane %v1308, %v1320
      %v1322 = vlaneseq
      %v1323 = vshrl.u32 %v1322, 7
      %v1324 = vsub.s32 3, %v1323
      %v1325 = vrot.slane %v1308, %v1324
      %v1330 = vmul.f32 %v737, %v1313
      %v1331 = vmul.f32 %v735, %v1317
      %v1332 = vmul.f32 %v733, %v1321
      %v1333 = vmul.f32 %v731, %v1325
      %v1334 = vmul.f32 %v738, %v1313
      %v1335 = vmul.f32 %v736, %v1317
      %v1336 = vmul.f32 %v734, %v1321
      %v1337 = vmul.f32 %v732, %v1325
      %s1338 = scalar_lea.vmem %s3, 28
      %v1339 = vld [vmem:[%s1338] sm:$0xf]
      %v1341 = vlaneseq
      %v1342 = vshrl.u32 %v1341, 7
      %v1343 = vsub.s32 0, %v1342
      %v1344 = vrot.slane %v1339, %v1343
      %v1345 = vlaneseq
      %v1346 = vshrl.u32 %v1345, 7
      %v1347 = vsub.s32 1, %v1346
      %v1348 = vrot.slane %v1339, %v1347
      %v1349 = vlaneseq
      %v1350 = vshrl.u32 %v1349, 7
      %v1351 = vsub.s32 2, %v1350
      %v1352 = vrot.slane %v1339, %v1351
      %v1353 = vlaneseq
      %v1354 = vshrl.u32 %v1353, 7
      %v1355 = vsub.s32 3, %v1354
      %v1356 = vrot.slane %v1339, %v1355
      %v1361 = vmul.f32 %v704, %v1344
      %v1362 = vmul.f32 %v705, %v1348
      %v1363 = vmul.f32 %v706, %v1352
      %v1364 = vmul.f32 %v707, %v1356
      %v1365 = vmul.f32 %v708, %v1344
      %v1366 = vmul.f32 %v709, %v1348
      %v1367 = vmul.f32 %v710, %v1352
      %v1368 = vmul.f32 %v711, %v1356
      %v1369 = vadd.f32 %v1330, %v1361
      %v1370 = vadd.f32 %v1331, %v1362
      %v1371 = vadd.f32 %v1332, %v1363
      %v1372 = vadd.f32 %v1333, %v1364
      %v1373 = vadd.f32 %v1334, %v1365
      %v1374 = vadd.f32 %v1335, %v1366
      %v1375 = vadd.f32 %v1336, %v1367
      %v1376 = vadd.f32 %v1337, %v1368
      %s1377 = scalar_lea.vmem %s3, 32
      %v1378 = vld [vmem:[%s1377] sm:$0xf]
      %v1380 = vlaneseq
      %v1381 = vshrl.u32 %v1380, 7
      %v1382 = vsub.s32 0, %v1381
      %v1383 = vrot.slane %v1378, %v1382
      %v1384 = vlaneseq
      %v1385 = vshrl.u32 %v1384, 7
      %v1386 = vsub.s32 1, %v1385
      %v1387 = vrot.slane %v1378, %v1386
      %v1388 = vlaneseq
      %v1389 = vshrl.u32 %v1388, 7
      %v1390 = vsub.s32 2, %v1389
      %v1391 = vrot.slane %v1378, %v1390
      %v1392 = vlaneseq
      %v1393 = vshrl.u32 %v1392, 7
      %v1394 = vsub.s32 3, %v1393
      %v1395 = vrot.slane %v1378, %v1394
      %v1400 = vmul.f32 %v760, %v1383
      %v1401 = vmul.f32 %v758, %v1387
      %v1402 = vmul.f32 %v756, %v1391
      %v1403 = vmul.f32 %v762, %v1395
      %v1404 = vmul.f32 %v761, %v1383
      %v1405 = vmul.f32 %v759, %v1387
      %v1406 = vmul.f32 %v757, %v1391
      %v1407 = vmul.f32 %v763, %v1395
      %v1408 = vadd.f32 %v1369, %v1400
      %v1409 = vadd.f32 %v1370, %v1401
      %v1410 = vadd.f32 %v1371, %v1402
      %v1411 = vadd.f32 %v1372, %v1403
      %v1412 = vadd.f32 %v1373, %v1404
      %v1413 = vadd.f32 %v1374, %v1405
      %v1414 = vadd.f32 %v1375, %v1406
      %v1415 = vadd.f32 %v1376, %v1407
      %s1416 = scalar_lea.vmem %s4, 32
      %v1417 = vld [vmem:[%s1416] sm:$0xff]
      %v1418 = vld [vmem:[%s1416 + $0x8] sm:$0xff]
      %v1420 = vsel %vm986, %v1417, 0
      %v1423 = vsel %vm986, %v1418, 0
      %1425 = vmatprep.subr.mxu0 0.0
      %1426 = vmatpush1.msra.mxu0 0.0
      %1427 = vmatprep.subr.mxu0 0.0
      %1428 = vmatpush1.msra.mxu0 0.0
      %1429 = vmatprep.subr.mxu0 0.0
      %1430 = vmatpush1.msra.mxu0 0.0
      %1431 = vmatprep.subr.mxu0 0.0
      %1432 = vmatpush1.msra.mxu0 0.0
      %1433 = vmatprep.subr.mxu0 0.0
      %1434 = vmatpush1.msra.mxu0 0.0
      %1435 = vmatprep.subr.mxu0 0.0
      %1436 = vmatpush1.msra.mxu0 0.0
      %1437 = vmatprep.subr.mxu0 0.0
      %1438 = vmatpush1.msra.mxu0 0.0
      %1439 = vmatprep.subr.mxu0 0.0
      %1440 = vmatpush1.msra.mxu0 0.0
      %1441 = vmatprep.subr.mxu0 0.0
      %1442 = vmatpush1.msra.mxu0 0.0
      %1443 = vmatprep.subr.mxu0 0.0
      %1444 = vmatpush1.msra.mxu0 0.0
      %1445 = vmatprep.subr.mxu0 0.0
      %1446 = vmatpush1.msra.mxu0 0.0
      %1447 = vmatprep.subr.mxu0 0.0
      %1448 = vmatpush1.msra.mxu0 0.0
      %1449 = vmatprep.subr.mxu0 0.0
      %1450 = vmatpush1.msra.mxu0 0.0
      %1451 = vmatprep.subr.mxu0 0.0
      %1452 = vmatpush1.msra.mxu0 0.0
      %1453 = vmatprep.subr.mxu0 %v1413
      %1454 = vmatpush1.msra.mxu0 %v1412
      %1455 = vmatprep.subr.mxu0 %v1409
      %1456 = vmatpush1.msra.mxu0 %v1408
      %1457 = vmatprep.subr.mxu0 0.0
      %1458 = vmatpush2.msra.mxu0 0.0
      %1459 = vmatprep.subr.mxu0 0.0
      %1460 = vmatpush2.msra.mxu0 0.0
      %1461 = vmatprep.subr.mxu0 0.0
      %1462 = vmatpush2.msra.mxu0 0.0
      %1463 = vmatprep.subr.mxu0 0.0
      %1464 = vmatpush2.msra.mxu0 0.0
      %1465 = vmatprep.subr.mxu0 0.0
      %1466 = vmatpush2.msra.mxu0 0.0
      %1467 = vmatprep.subr.mxu0 0.0
      %1468 = vmatpush2.msra.mxu0 0.0
      %1469 = vmatprep.subr.mxu0 0.0
      %1470 = vmatpush2.msra.mxu0 0.0
      %1471 = vmatprep.subr.mxu0 0.0
      %1472 = vmatpush2.msra.mxu0 0.0
      %1473 = vmatprep.subr.mxu0 0.0
      %1474 = vmatpush2.msra.mxu0 0.0
      %1475 = vmatprep.subr.mxu0 0.0
      %1476 = vmatpush2.msra.mxu0 0.0
      %1477 = vmatprep.subr.mxu0 0.0
      %1478 = vmatpush2.msra.mxu0 0.0
      %1479 = vmatprep.subr.mxu0 0.0
      %1480 = vmatpush2.msra.mxu0 0.0
      %1481 = vmatprep.subr.mxu0 0.0
      %1482 = vmatpush2.msra.mxu0 0.0
      %1483 = vmatprep.subr.mxu0 0.0
      %1484 = vmatpush2.msra.mxu0 0.0
      %1485 = vmatprep.subr.mxu0 0.0
      %1486 = vmatpush2.msra.mxu0 0.0
      %1487 = vmatprep.subr.mxu0 0.0
      %1488 = vmatpush2.msra.mxu0 0.0
      %1489 = vmatprep.mubr.f32.mxu0 0.0
      %1490 = vmatmul.mubr.f32.gmra.mxu0 %v1420
      %v1491 = vpop.f32.mrf.mxu0
      %v1492 = vadd.f32 0.0, %v1491
      %v1493 = vpop.f32.mrf.mxu0
      %v1494 = vadd.f32 0.0, %v1493
      %1495 = vmatprep.mubr.f32.mxu0 0.0
      %1496 = vmatmul.mubr.f32.gmra.mxu0 %v1423
      %v1497 = vpop.f32.mrf.mxu0
      %v1498 = vadd.f32 0.0, %v1497
      %v1499 = vpop.f32.mrf.mxu0
      %v1500 = vadd.f32 0.0, %v1499
      %1501 = vdwg.mxu0
      %1502 = vmatprep.subr.mxu0 0.0
      %1503 = vmatpush1.msra.mxu0 0.0
      %1504 = vmatprep.subr.mxu0 0.0
      %1505 = vmatpush1.msra.mxu0 0.0
      %1506 = vmatprep.subr.mxu0 0.0
      %1507 = vmatpush1.msra.mxu0 0.0
      %1508 = vmatprep.subr.mxu0 0.0
      %1509 = vmatpush1.msra.mxu0 0.0
      %1510 = vmatprep.subr.mxu0 0.0
      %1511 = vmatpush1.msra.mxu0 0.0
      %1512 = vmatprep.subr.mxu0 0.0
      %1513 = vmatpush1.msra.mxu0 0.0
      %1514 = vmatprep.subr.mxu0 0.0
      %1515 = vmatpush1.msra.mxu0 0.0
      %1516 = vmatprep.subr.mxu0 0.0
      %1517 = vmatpush1.msra.mxu0 0.0
      %1518 = vmatprep.subr.mxu0 0.0
      %1519 = vmatpush1.msra.mxu0 0.0
      %1520 = vmatprep.subr.mxu0 0.0
      %1521 = vmatpush1.msra.mxu0 0.0
      %1522 = vmatprep.subr.mxu0 0.0
      %1523 = vmatpush1.msra.mxu0 0.0
      %1524 = vmatprep.subr.mxu0 0.0
      %1525 = vmatpush1.msra.mxu0 0.0
      %1526 = vmatprep.subr.mxu0 0.0
      %1527 = vmatpush1.msra.mxu0 0.0
      %1528 = vmatprep.subr.mxu0 0.0
      %1529 = vmatpush1.msra.mxu0 0.0
      %1530 = vmatprep.subr.mxu0 %v1415
      %1531 = vmatpush1.msra.mxu0 %v1414
      %1532 = vmatprep.subr.mxu0 %v1411
      %1533 = vmatpush1.msra.mxu0 %v1410
      %1534 = vmatprep.subr.mxu0 0.0
      %1535 = vmatpush2.msra.mxu0 0.0
      %1536 = vmatprep.subr.mxu0 0.0
      %1537 = vmatpush2.msra.mxu0 0.0
      %1538 = vmatprep.subr.mxu0 0.0
      %1539 = vmatpush2.msra.mxu0 0.0
      %1540 = vmatprep.subr.mxu0 0.0
      %1541 = vmatpush2.msra.mxu0 0.0
      %1542 = vmatprep.subr.mxu0 0.0
      %1543 = vmatpush2.msra.mxu0 0.0
      %1544 = vmatprep.subr.mxu0 0.0
      %1545 = vmatpush2.msra.mxu0 0.0
      %1546 = vmatprep.subr.mxu0 0.0
      %1547 = vmatpush2.msra.mxu0 0.0
      %1548 = vmatprep.subr.mxu0 0.0
      %1549 = vmatpush2.msra.mxu0 0.0
      %1550 = vmatprep.subr.mxu0 0.0
      %1551 = vmatpush2.msra.mxu0 0.0
      %1552 = vmatprep.subr.mxu0 0.0
      %1553 = vmatpush2.msra.mxu0 0.0
      %1554 = vmatprep.subr.mxu0 0.0
      %1555 = vmatpush2.msra.mxu0 0.0
      %1556 = vmatprep.subr.mxu0 0.0
      %1557 = vmatpush2.msra.mxu0 0.0
      %1558 = vmatprep.subr.mxu0 0.0
      %1559 = vmatpush2.msra.mxu0 0.0
      %1560 = vmatprep.subr.mxu0 0.0
      %1561 = vmatpush2.msra.mxu0 0.0
      %1562 = vmatprep.subr.mxu0 0.0
      %1563 = vmatpush2.msra.mxu0 0.0
      %1564 = vmatprep.subr.mxu0 0.0
      %1565 = vmatpush2.msra.mxu0 0.0
      %1566 = vmatprep.mubr.f32.mxu0 0.0
      %1567 = vmatmul.mubr.f32.gmra.mxu0 %v1420
      %v1568 = vpop.f32.mrf.mxu0
      %v1569 = vadd.f32 0.0, %v1568
      %v1570 = vpop.f32.mrf.mxu0
      %v1571 = vadd.f32 0.0, %v1570
      %1572 = vmatprep.mubr.f32.mxu0 0.0
      %1573 = vmatmul.mubr.f32.gmra.mxu0 %v1423
      %v1574 = vpop.f32.mrf.mxu0
      %v1575 = vadd.f32 0.0, %v1574
      %v1576 = vpop.f32.mrf.mxu0
      %v1577 = vadd.f32 0.0, %v1576
      %1578 = vdwg.mxu0
      %v1579 = vadd.f32 %v1220, %v1492
      %v1580 = vadd.f32 %v1222, %v1494
      %v1581 = vadd.f32 %v1297, %v1569
      %v1582 = vadd.f32 %v1299, %v1571
      %v1583 = vadd.f32 %v1226, %v1498
      %v1584 = vadd.f32 %v1228, %v1500
      %v1585 = vadd.f32 %v1303, %v1575
      %v1586 = vadd.f32 %v1305, %v1577
      %v1587 = vld [vmem:[%s5] sm:$0xf]
      %v1589 = vlaneseq
      %v1590 = vshrl.u32 %v1589, 7
      %v1591 = vsub.s32 0, %v1590
      %v1592 = vrot.slane %v1587, %v1591
      %v1593 = vlaneseq
      %v1594 = vshrl.u32 %v1593, 7
      %v1595 = vsub.s32 1, %v1594
      %v1596 = vrot.slane %v1587, %v1595
      %v1597 = vlaneseq
      %v1598 = vshrl.u32 %v1597, 7
      %v1599 = vsub.s32 2, %v1598
      %v1600 = vrot.slane %v1587, %v1599
      %v1601 = vlaneseq
      %v1602 = vshrl.u32 %v1601, 7
      %v1603 = vsub.s32 3, %v1602
      %v1604 = vrot.slane %v1587, %v1603
      %v1609 = vadd.f32 %v1579, %v1592
      %v1610 = vadd.f32 %v1580, %v1596
      %v1611 = vadd.f32 %v1581, %v1600
      %v1612 = vadd.f32 %v1582, %v1604
      %v1613 = vadd.f32 %v1583, %v1592
      %v1614 = vadd.f32 %v1584, %v1596
      %v1615 = vadd.f32 %v1585, %v1600
      %v1616 = vadd.f32 %v1586, %v1604
      %v1617 = vxor.u32 %v1609, 2147483648
      %v1618 = vxor.u32 %v1610, 2147483648
      %v1619 = vxor.u32 %v1611, 2147483648
      %v1620 = vxor.u32 %v1612, 2147483648
      %v1621 = vxor.u32 %v1613, 2147483648
      %v1622 = vxor.u32 %v1614, 2147483648
      %v1623 = vxor.u32 %v1615, 2147483648
      %v1624 = vxor.u32 %v1616, 2147483648
      %v1625 = vmul.f32 %v1617, 1.442695
      %v1626 = vpow.pop %v1625
      %v1627 = vmul.f32 %v1618, 1.442695
      %v1628 = vpow.pop %v1627
      %v1629 = vmul.f32 %v1619, 1.442695
      %v1630 = vpow.pop %v1629
      %v1631 = vmul.f32 %v1620, 1.442695
      %v1632 = vpow.pop %v1631
      %v1633 = vmul.f32 %v1621, 1.442695
      %v1634 = vpow.pop %v1633
      %v1635 = vmul.f32 %v1622, 1.442695
      %v1636 = vpow.pop %v1635
      %v1637 = vmul.f32 %v1623, 1.442695
      %v1638 = vpow.pop %v1637
      %v1639 = vmul.f32 %v1624, 1.442695
      %v1640 = vpow.pop %v1639
      %v1641 = vadd.f32 %v1626, 1.0
      %v1642 = vadd.f32 %v1628, 1.0
      %v1643 = vadd.f32 %v1630, 1.0
      %v1644 = vadd.f32 %v1632, 1.0
      %v1645 = vadd.f32 %v1634, 1.0
      %v1646 = vadd.f32 %v1636, 1.0
      %v1647 = vadd.f32 %v1638, 1.0
      %v1648 = vadd.f32 %v1640, 1.0
      %v1649 = vrcp.pop %v1641
      %v1650 = vmul.f32 1.0, %v1649
      %v1651 = vrcp.pop %v1642
      %v1652 = vmul.f32 1.0, %v1651
      %v1653 = vrcp.pop %v1643
      %v1654 = vmul.f32 1.0, %v1653
      %v1655 = vrcp.pop %v1644
      %v1656 = vmul.f32 1.0, %v1655
      %v1657 = vrcp.pop %v1645
      %v1658 = vmul.f32 1.0, %v1657
      %v1659 = vrcp.pop %v1646
      %v1660 = vmul.f32 1.0, %v1659
      %v1661 = vrcp.pop %v1647
      %v1662 = vmul.f32 1.0, %v1661
      %v1663 = vrcp.pop %v1648
      %v1664 = vmul.f32 1.0, %v1663
      %v1665 = vmul.f32 %v1609, %v1650
      %v1666 = vmul.f32 %v1610, %v1652
      %v1667 = vmul.f32 %v1611, %v1654
      %v1668 = vmul.f32 %v1612, %v1656
      %v1669 = vmul.f32 %v1613, %v1658
      %v1670 = vmul.f32 %v1614, %v1660
      %v1671 = vmul.f32 %v1615, %v1662
      %v1672 = vmul.f32 %v1616, %v1664
      %v1673 = vadd.f32 %v1665, %v1669
      %v1674 = vrot.slane %v1673, 4
      %v1675 = vadd.f32 %v1673, %v1674
      %v1676 = vrot.slane %v1675, 2
      %v1677 = vadd.f32 %v1675, %v1676
      %v1678 = vrot.slane %v1677, 1
      %v1679 = vadd.f32 %v1677, %v1678
      %v1680 = vadd.f32 %v1666, %v1670
      %v1681 = vrot.slane %v1680, 4
      %v1682 = vadd.f32 %v1680, %v1681
      %v1683 = vrot.slane %v1682, 2
      %v1684 = vadd.f32 %v1682, %v1683
      %v1685 = vrot.slane %v1684, 1
      %v1686 = vadd.f32 %v1684, %v1685
      %v1687 = vadd.f32 %v1667, %v1671
      %v1688 = vrot.slane %v1687, 4
      %v1689 = vadd.f32 %v1687, %v1688
      %v1690 = vrot.slane %v1689, 2
      %v1691 = vadd.f32 %v1689, %v1690
      %v1692 = vrot.slane %v1691, 1
      %v1693 = vadd.f32 %v1691, %v1692
      %v1694 = vadd.f32 %v1668, %v1672
      %v1695 = vrot.slane %v1694, 4
      %v1696 = vadd.f32 %v1694, %v1695
      %v1697 = vrot.slane %v1696, 2
      %v1698 = vadd.f32 %v1696, %v1697
      %v1699 = vrot.slane %v1698, 1
      %v1700 = vadd.f32 %v1698, %v1699
      %v1701 = vld [vmem:[%s6] sm:$0xff]
      %v1702 = vld [vmem:[%s6 + $0x8] sm:$0xff]
      %v1703 = vld [vmem:[%s6 + $0x10] sm:$0xff]
      %v1704 = vld [vmem:[%s6 + $0x18] sm:$0xff]
      %v1705 = vld [vmem:[%s6 + $0x20] sm:$0xff]
      %v1706 = vld [vmem:[%s6 + $0x28] sm:$0xff]
      %v1707 = vld [vmem:[%s6 + $0x30] sm:$0xff]
      %v1708 = vld [vmem:[%s6 + $0x38] sm:$0xff]
      %v1709 = vld [vmem:[%s6 + $0x40] sm:$0xff]
      %v1710 = vld [vmem:[%s6 + $0x48] sm:$0xff]
      %v1711 = vld [vmem:[%s6 + $0x50] sm:$0xff]
      %v1712 = vld [vmem:[%s6 + $0x58] sm:$0xff]
      %v1713 = vld [vmem:[%s6 + $0x60] sm:$0xff]
      %v1714 = vld [vmem:[%s6 + $0x68] sm:$0xff]
      %v1715 = vld [vmem:[%s6 + $0x70] sm:$0xff]
      %v1716 = vld [vmem:[%s6 + $0x78] sm:$0xff]
      %v1717 = vld [vmem:[%s6 + $0x80] sm:$0xff]
      %v1718 = vld [vmem:[%s6 + $0x88] sm:$0xff]
      %v1719 = vld [vmem:[%s6 + $0x90] sm:$0xff]
      %v1720 = vld [vmem:[%s6 + $0x98] sm:$0xff]
      %v1721 = vld [vmem:[%s6 + $0xa0] sm:$0xff]
      %v1722 = vld [vmem:[%s6 + $0xa8] sm:$0xff]
      %v1723 = vld [vmem:[%s6 + $0xb0] sm:$0xff]
      %v1724 = vld [vmem:[%s6 + $0xb8] sm:$0xff]
      %v1725 = vld [vmem:[%s6 + $0xc0] sm:$0xff]
      %v1726 = vld [vmem:[%s6 + $0xc8] sm:$0xff]
      %v1727 = vld [vmem:[%s6 + $0xd0] sm:$0xff]
      %v1728 = vld [vmem:[%s6 + $0xd8] sm:$0xff]
      %v1729 = vld [vmem:[%s6 + $0xe0] sm:$0xff]
      %v1730 = vld [vmem:[%s6 + $0xe8] sm:$0xff]
      %v1731 = vld [vmem:[%s6 + $0xf0] sm:$0xff]
      %v1732 = vld [vmem:[%s6 + $0xf8] sm:$0xff]
      %v1733 = vld [vmem:[%s6 + $0x100] sm:$0xff]
      %v1734 = vld [vmem:[%s6 + $0x108] sm:$0xff]
      %v1735 = vld [vmem:[%s6 + $0x110] sm:$0xff]
      %v1736 = vld [vmem:[%s6 + $0x118] sm:$0xff]
      %v1737 = vld [vmem:[%s6 + $0x120] sm:$0xff]
      %v1738 = vld [vmem:[%s6 + $0x128] sm:$0xff]
      %v1739 = vld [vmem:[%s6 + $0x130] sm:$0xff]
      %v1740 = vld [vmem:[%s6 + $0x138] sm:$0xff]
      %v1741 = vld [vmem:[%s6 + $0x140] sm:$0xff]
      %v1742 = vld [vmem:[%s6 + $0x148] sm:$0xff]
      %v1743 = vld [vmem:[%s6 + $0x150] sm:$0xff]
      %v1744 = vld [vmem:[%s6 + $0x158] sm:$0xff]
      %v1745 = vld [vmem:[%s6 + $0x160] sm:$0xff]
      %v1746 = vld [vmem:[%s6 + $0x168] sm:$0xff]
      %v1747 = vld [vmem:[%s6 + $0x170] sm:$0xff]
      %v1748 = vld [vmem:[%s6 + $0x178] sm:$0xff]
      %v1749 = vld [vmem:[%s6 + $0x180] sm:$0xff]
      %v1750 = vld [vmem:[%s6 + $0x188] sm:$0xff]
      %v1751 = vld [vmem:[%s6 + $0x190] sm:$0xff]
      %v1752 = vld [vmem:[%s6 + $0x198] sm:$0xff]
      %v1753 = vld [vmem:[%s6 + $0x1a0] sm:$0xff]
      %v1754 = vld [vmem:[%s6 + $0x1a8] sm:$0xff]
      %v1755 = vld [vmem:[%s6 + $0x1b0] sm:$0xff]
      %v1756 = vld [vmem:[%s6 + $0x1b8] sm:$0xff]
      %v1757 = vld [vmem:[%s6 + $0x1c0] sm:$0xff]
      %v1758 = vld [vmem:[%s6 + $0x1c8] sm:$0xff]
      %v1759 = vld [vmem:[%s6 + $0x1d0] sm:$0xff]
      %v1760 = vld [vmem:[%s6 + $0x1d8] sm:$0xff]
      %v1761 = vld [vmem:[%s6 + $0x1e0] sm:$0xff]
      %v1762 = vld [vmem:[%s6 + $0x1e8] sm:$0xff]
      %v1763 = vld [vmem:[%s6 + $0x1f0] sm:$0xff]
      %v1764 = vld [vmem:[%s6 + $0x1f8] sm:$0xff]
      %v1765 = vld [vmem:[%s7] sm:$0x1]
      %1766 = vmatprep.subr.mxu0 0.0
      %1767 = vmatpush1.msra.mxu0 %v1716
      %1768 = vmatprep.subr.mxu0 0.0
      %1769 = vmatpush1.msra.mxu0 %v1715
      %1770 = vmatprep.subr.mxu0 0.0
      %1771 = vmatpush1.msra.mxu0 %v1714
      %1772 = vmatprep.subr.mxu0 0.0
      %1773 = vmatpush1.msra.mxu0 %v1713
      %1774 = vmatprep.subr.mxu0 0.0
      %1775 = vmatpush1.msra.mxu0 %v1712
      %1776 = vmatprep.subr.mxu0 0.0
      %1777 = vmatpush1.msra.mxu0 %v1711
      %1778 = vmatprep.subr.mxu0 0.0
      %1779 = vmatpush1.msra.mxu0 %v1710
      %1780 = vmatprep.subr.mxu0 0.0
      %1781 = vmatpush1.msra.mxu0 %v1709
      %1782 = vmatprep.subr.mxu0 0.0
      %1783 = vmatpush1.msra.mxu0 %v1708
      %1784 = vmatprep.subr.mxu0 0.0
      %1785 = vmatpush1.msra.mxu0 %v1707
      %1786 = vmatprep.subr.mxu0 0.0
      %1787 = vmatpush1.msra.mxu0 %v1706
      %1788 = vmatprep.subr.mxu0 0.0
      %1789 = vmatpush1.msra.mxu0 %v1705
      %1790 = vmatprep.subr.mxu0 0.0
      %1791 = vmatpush1.msra.mxu0 %v1704
      %1792 = vmatprep.subr.mxu0 0.0
      %1793 = vmatpush1.msra.mxu0 %v1703
      %1794 = vmatprep.subr.mxu0 0.0
      %1795 = vmatpush1.msra.mxu0 %v1702
      %1796 = vmatprep.subr.mxu0 0.0
      %1797 = vmatpush1.msra.mxu0 %v1701
      %1798 = vmatprep.subr.mxu0 0.0
      %1799 = vmatpush2.msra.mxu0 %v1732
      %1800 = vmatprep.subr.mxu0 0.0
      %1801 = vmatpush2.msra.mxu0 %v1731
      %1802 = vmatprep.subr.mxu0 0.0
      %1803 = vmatpush2.msra.mxu0 %v1730
      %1804 = vmatprep.subr.mxu0 0.0
      %1805 = vmatpush2.msra.mxu0 %v1729
      %1806 = vmatprep.subr.mxu0 0.0
      %1807 = vmatpush2.msra.mxu0 %v1728
      %1808 = vmatprep.subr.mxu0 0.0
      %1809 = vmatpush2.msra.mxu0 %v1727
      %1810 = vmatprep.subr.mxu0 0.0
      %1811 = vmatpush2.msra.mxu0 %v1726
      %1812 = vmatprep.subr.mxu0 0.0
      %1813 = vmatpush2.msra.mxu0 %v1725
      %1814 = vmatprep.subr.mxu0 0.0
      %1815 = vmatpush2.msra.mxu0 %v1724
      %1816 = vmatprep.subr.mxu0 0.0
      %1817 = vmatpush2.msra.mxu0 %v1723
      %1818 = vmatprep.subr.mxu0 0.0
      %1819 = vmatpush2.msra.mxu0 %v1722
      %1820 = vmatprep.subr.mxu0 0.0
      %1821 = vmatpush2.msra.mxu0 %v1721
      %1822 = vmatprep.subr.mxu0 0.0
      %1823 = vmatpush2.msra.mxu0 %v1720
      %1824 = vmatprep.subr.mxu0 0.0
      %1825 = vmatpush2.msra.mxu0 %v1719
      %1826 = vmatprep.subr.mxu0 0.0
      %1827 = vmatpush2.msra.mxu0 %v1718
      %1828 = vmatprep.subr.mxu0 0.0
      %1829 = vmatpush2.msra.mxu0 %v1717
      %1830 = vmatprep.mubr.f32.mxu0 %v1686
      %1831 = vmatmul.mubr.f32.gmra.mxu0 %v1679
      %v1832 = vpop.f32.mrf.mxu0
      %v1833 = vadd.f32 %v1765, %v1832
      %v1834 = vpop.f32.mrf.mxu0
      %1835 = vdwg.mxu0
      %1836 = vmatprep.subr.mxu0 0.0
      %1837 = vmatpush1.msra.mxu0 %v1748
      %1838 = vmatprep.subr.mxu0 0.0
      %1839 = vmatpush1.msra.mxu0 %v1747
      %1840 = vmatprep.subr.mxu0 0.0
      %1841 = vmatpush1.msra.mxu0 %v1746
      %1842 = vmatprep.subr.mxu0 0.0
      %1843 = vmatpush1.msra.mxu0 %v1745
      %1844 = vmatprep.subr.mxu0 0.0
      %1845 = vmatpush1.msra.mxu0 %v1744
      %1846 = vmatprep.subr.mxu0 0.0
      %1847 = vmatpush1.msra.mxu0 %v1743
      %1848 = vmatprep.subr.mxu0 0.0
      %1849 = vmatpush1.msra.mxu0 %v1742
      %1850 = vmatprep.subr.mxu0 0.0
      %1851 = vmatpush1.msra.mxu0 %v1741
      %1852 = vmatprep.subr.mxu0 0.0
      %1853 = vmatpush1.msra.mxu0 %v1740
      %1854 = vmatprep.subr.mxu0 0.0
      %1855 = vmatpush1.msra.mxu0 %v1739
      %1856 = vmatprep.subr.mxu0 0.0
      %1857 = vmatpush1.msra.mxu0 %v1738
      %1858 = vmatprep.subr.mxu0 0.0
      %1859 = vmatpush1.msra.mxu0 %v1737
      %1860 = vmatprep.subr.mxu0 0.0
      %1861 = vmatpush1.msra.mxu0 %v1736
      %1862 = vmatprep.subr.mxu0 0.0
      %1863 = vmatpush1.msra.mxu0 %v1735
      %1864 = vmatprep.subr.mxu0 0.0
      %1865 = vmatpush1.msra.mxu0 %v1734
      %1866 = vmatprep.subr.mxu0 0.0
      %1867 = vmatpush1.msra.mxu0 %v1733
      %1868 = vmatprep.subr.mxu0 0.0
      %1869 = vmatpush2.msra.mxu0 %v1764
      %1870 = vmatprep.subr.mxu0 0.0
      %1871 = vmatpush2.msra.mxu0 %v1763
      %1872 = vmatprep.subr.mxu0 0.0
      %1873 = vmatpush2.msra.mxu0 %v1762
      %1874 = vmatprep.subr.mxu0 0.0
      %1875 = vmatpush2.msra.mxu0 %v1761
      %1876 = vmatprep.subr.mxu0 0.0
      %1877 = vmatpush2.msra.mxu0 %v1760
      %1878 = vmatprep.subr.mxu0 0.0
      %1879 = vmatpush2.msra.mxu0 %v1759
      %1880 = vmatprep.subr.mxu0 0.0
      %1881 = vmatpush2.msra.mxu0 %v1758
      %1882 = vmatprep.subr.mxu0 0.0
      %1883 = vmatpush2.msra.mxu0 %v1757
      %1884 = vmatprep.subr.mxu0 0.0
      %1885 = vmatpush2.msra.mxu0 %v1756
      %1886 = vmatprep.subr.mxu0 0.0
      %1887 = vmatpush2.msra.mxu0 %v1755
      %1888 = vmatprep.subr.mxu0 0.0
      %1889 = vmatpush2.msra.mxu0 %v1754
      %1890 = vmatprep.subr.mxu0 0.0
      %1891 = vmatpush2.msra.mxu0 %v1753
      %1892 = vmatprep.subr.mxu0 0.0
      %1893 = vmatpush2.msra.mxu0 %v1752
      %1894 = vmatprep.subr.mxu0 0.0
      %1895 = vmatpush2.msra.mxu0 %v1751
      %1896 = vmatprep.subr.mxu0 0.0
      %1897 = vmatpush2.msra.mxu0 %v1750
      %1898 = vmatprep.subr.mxu0 0.0
      %1899 = vmatpush2.msra.mxu0 %v1749
      %1900 = vmatprep.mubr.f32.mxu0 %v1700
      %1901 = vmatmul.mubr.f32.gmra.mxu0 %v1693
      %v1902 = vpop.f32.mrf.mxu0
      %v1903 = vadd.f32 %v1833, %v1902
      %v1904 = vpop.f32.mrf.mxu0
      %1905 = vdwg.mxu0
      %v1906 = vxor.u32 %v1903, 2147483648
      %v1907 = vmul.f32 %v1906, 1.442695
      %v1908 = vpow.pop %v1907
      %v1909 = vadd.f32 %v1908, 1.0
      %v1910 = vrcp.pop %v1909
      %v1911 = vmul.f32 1.0, %v1910
      %v1912 = vmul.f32 %v1903, %v1911
      %v1913 = vld [vmem:[%s8] sm:$0xff]
      %v1914 = vld [vmem:[%s9] sm:$0xf]
      %v1916 = vcombine.high %v1913, %v1913
      %v1918 = vunpack.c.l.s4 1983009808
      %v1919 = vunpack.c.0.s8 %v1918
      %v1920 = vlaneseq
      %v1921 = vshrl.u32 %v1920, 7
      %v1922 = vsub.s32 %v1919, %v1921
      %v1923 = vrot.slane %v1913, %v1922
      %v1925 = vunpack.c.l.s4 1983009808
      %v1926 = vunpack.c.0.s8 %v1925
      %v1927 = vlaneseq
      %v1928 = vshrl.u32 %v1927, 7
      %v1929 = vsub.s32 %v1926, %v1928
      %v1930 = vrot.slane %v1916, %v1929
      %v1931 = vcombine.high %v1923, %v1923
      %v1932 = vcombine.high %v1930, %v1930
      %v1934 = vlaneseq
      %v1935 = vshrl.u32 %v1934, 7
      %v1936 = vsub.s32 0, %v1935
      %v1937 = vrot.slane %v1914, %v1936
      %v1938 = vlaneseq
      %v1939 = vshrl.u32 %v1938, 7
      %v1940 = vsub.s32 1, %v1939
      %v1941 = vrot.slane %v1914, %v1940
      %v1942 = vlaneseq
      %v1943 = vshrl.u32 %v1942, 7
      %v1944 = vsub.s32 2, %v1943
      %v1945 = vrot.slane %v1914, %v1944
      %v1946 = vlaneseq
      %v1947 = vshrl.u32 %v1946, 7
      %v1948 = vsub.s32 3, %v1947
      %v1949 = vrot.slane %v1914, %v1948
      %vm1954 = vcmask 15360
      %v1956 = vsel %vm1954, %v1912, 0
      %vm1958 = vcmask 1041408
      %v1959 = vsel %vm1958, %v1923, 0
      %v1961 = vsel %vm1958, %v1931, 0
      %v1963 = vsel %vm1958, %v1930, 0
      %v1965 = vsel %vm1958, %v1932, 0
      %1967 = vmatprep.subr.mxu0 0.0
      %1968 = vmatpush1.msra.mxu0 0.0
      %1969 = vmatprep.subr.mxu0 0.0
      %1970 = vmatpush1.msra.mxu0 0.0
      %1971 = vmatprep.subr.mxu0 0.0
      %1972 = vmatpush1.msra.mxu0 0.0
      %1973 = vmatprep.subr.mxu0 0.0
      %1974 = vmatpush1.msra.mxu0 0.0
      %1975 = vmatprep.subr.mxu0 0.0
      %1976 = vmatpush1.msra.mxu0 0.0
      %1977 = vmatprep.subr.mxu0 0.0
      %1978 = vmatpush1.msra.mxu0 0.0
      %1979 = vmatprep.subr.mxu0 0.0
      %1980 = vmatpush1.msra.mxu0 0.0
      %1981 = vmatprep.subr.mxu0 0.0
      %1982 = vmatpush1.msra.mxu0 0.0
      %1983 = vmatprep.subr.mxu0 0.0
      %1984 = vmatpush1.msra.mxu0 0.0
      %1985 = vmatprep.subr.mxu0 0.0
      %1986 = vmatpush1.msra.mxu0 0.0
      %1987 = vmatprep.subr.mxu0 0.0
      %1988 = vmatpush1.msra.mxu0 0.0
      %1989 = vmatprep.subr.mxu0 0.0
      %1990 = vmatpush1.msra.mxu0 0.0
      %1991 = vmatprep.subr.mxu0 0.0
      %1992 = vmatpush1.msra.mxu0 0.0
      %1993 = vmatprep.subr.mxu0 0.0
      %1994 = vmatpush1.msra.mxu0 0.0
      %1995 = vmatprep.subr.mxu0 0.0
      %1996 = vmatpush1.msra.mxu0 0.0
      %1997 = vmatprep.subr.mxu0 %v1961
      %1998 = vmatpush1.msra.mxu0 %v1959
      %1999 = vmatprep.subr.mxu0 0.0
      %2000 = vmatpush2.msra.mxu0 0.0
      %2001 = vmatprep.subr.mxu0 0.0
      %2002 = vmatpush2.msra.mxu0 0.0
      %2003 = vmatprep.subr.mxu0 0.0
      %2004 = vmatpush2.msra.mxu0 0.0
      %2005 = vmatprep.subr.mxu0 0.0
      %2006 = vmatpush2.msra.mxu0 0.0
      %2007 = vmatprep.subr.mxu0 0.0
      %2008 = vmatpush2.msra.mxu0 0.0
      %2009 = vmatprep.subr.mxu0 0.0
      %2010 = vmatpush2.msra.mxu0 0.0
      %2011 = vmatprep.subr.mxu0 0.0
      %2012 = vmatpush2.msra.mxu0 0.0
      %2013 = vmatprep.subr.mxu0 0.0
      %2014 = vmatpush2.msra.mxu0 0.0
      %2015 = vmatprep.subr.mxu0 0.0
      %2016 = vmatpush2.msra.mxu0 0.0
      %2017 = vmatprep.subr.mxu0 0.0
      %2018 = vmatpush2.msra.mxu0 0.0
      %2019 = vmatprep.subr.mxu0 0.0
      %2020 = vmatpush2.msra.mxu0 0.0
      %2021 = vmatprep.subr.mxu0 0.0
      %2022 = vmatpush2.msra.mxu0 0.0
      %2023 = vmatprep.subr.mxu0 0.0
      %2024 = vmatpush2.msra.mxu0 0.0
      %2025 = vmatprep.subr.mxu0 0.0
      %2026 = vmatpush2.msra.mxu0 0.0
      %2027 = vmatprep.subr.mxu0 0.0
      %2028 = vmatpush2.msra.mxu0 0.0
      %2029 = vmatprep.subr.mxu0 0.0
      %2030 = vmatpush2.msra.mxu0 0.0
      %2031 = vmatprep.mubr.f32.mxu0 0.0
      %2032 = vmatmul.mubr.f32.gmra.mxu0 %v1956
      %v2033 = vpop.f32.mrf.mxu0
      %v2034 = vadd.f32 %v1937, %v2033
      %v2035 = vpop.f32.mrf.mxu0
      %v2036 = vadd.f32 %v1941, %v2035
      %2037 = vdwg.mxu0
      %2038 = vmatprep.subr.mxu0 0.0
      %2039 = vmatpush1.msra.mxu0 0.0
      %2040 = vmatprep.subr.mxu0 0.0
      %2041 = vmatpush1.msra.mxu0 0.0
      %2042 = vmatprep.subr.mxu0 0.0
      %2043 = vmatpush1.msra.mxu0 0.0
      %2044 = vmatprep.subr.mxu0 0.0
      %2045 = vmatpush1.msra.mxu0 0.0
      %2046 = vmatprep.subr.mxu0 0.0
      %2047 = vmatpush1.msra.mxu0 0.0
      %2048 = vmatprep.subr.mxu0 0.0
      %2049 = vmatpush1.msra.mxu0 0.0
      %2050 = vmatprep.subr.mxu0 0.0
      %2051 = vmatpush1.msra.mxu0 0.0
      %2052 = vmatprep.subr.mxu0 0.0
      %2053 = vmatpush1.msra.mxu0 0.0
      %2054 = vmatprep.subr.mxu0 0.0
      %2055 = vmatpush1.msra.mxu0 0.0
      %2056 = vmatprep.subr.mxu0 0.0
      %2057 = vmatpush1.msra.mxu0 0.0
      %2058 = vmatprep.subr.mxu0 0.0
      %2059 = vmatpush1.msra.mxu0 0.0
      %2060 = vmatprep.subr.mxu0 0.0
      %2061 = vmatpush1.msra.mxu0 0.0
      %2062 = vmatprep.subr.mxu0 0.0
      %2063 = vmatpush1.msra.mxu0 0.0
      %2064 = vmatprep.subr.mxu0 0.0
      %2065 = vmatpush1.msra.mxu0 0.0
      %2066 = vmatprep.subr.mxu0 0.0
      %2067 = vmatpush1.msra.mxu0 0.0
      %2068 = vmatprep.subr.mxu0 %v1965
      %2069 = vmatpush1.msra.mxu0 %v1963
      %2070 = vmatprep.subr.mxu0 0.0
      %2071 = vmatpush2.msra.mxu0 0.0
      %2072 = vmatprep.subr.mxu0 0.0
      %2073 = vmatpush2.msra.mxu0 0.0
      %2074 = vmatprep.subr.mxu0 0.0
      %2075 = vmatpush2.msra.mxu0 0.0
      %2076 = vmatprep.subr.mxu0 0.0
      %2077 = vmatpush2.msra.mxu0 0.0
      %2078 = vmatprep.subr.mxu0 0.0
      %2079 = vmatpush2.msra.mxu0 0.0
      %2080 = vmatprep.subr.mxu0 0.0
      %2081 = vmatpush2.msra.mxu0 0.0
      %2082 = vmatprep.subr.mxu0 0.0
      %2083 = vmatpush2.msra.mxu0 0.0
      %2084 = vmatprep.subr.mxu0 0.0
      %2085 = vmatpush2.msra.mxu0 0.0
      %2086 = vmatprep.subr.mxu0 0.0
      %2087 = vmatpush2.msra.mxu0 0.0
      %2088 = vmatprep.subr.mxu0 0.0
      %2089 = vmatpush2.msra.mxu0 0.0
      %2090 = vmatprep.subr.mxu0 0.0
      %2091 = vmatpush2.msra.mxu0 0.0
      %2092 = vmatprep.subr.mxu0 0.0
      %2093 = vmatpush2.msra.mxu0 0.0
      %2094 = vmatprep.subr.mxu0 0.0
      %2095 = vmatpush2.msra.mxu0 0.0
      %2096 = vmatprep.subr.mxu0 0.0
      %2097 = vmatpush2.msra.mxu0 0.0
      %2098 = vmatprep.subr.mxu0 0.0
      %2099 = vmatpush2.msra.mxu0 0.0
      %2100 = vmatprep.subr.mxu0 0.0
      %2101 = vmatpush2.msra.mxu0 0.0
      %2102 = vmatprep.mubr.f32.mxu0 0.0
      %2103 = vmatmul.mubr.f32.gmra.mxu0 %v1956
      %v2104 = vpop.f32.mrf.mxu0
      %v2105 = vadd.f32 %v1945, %v2104
      %v2106 = vpop.f32.mrf.mxu0
      %v2107 = vadd.f32 %v1949, %v2106
      %2108 = vdwg.mxu0
      %v2109 = vxor.u32 %v2034, 2147483648
      %v2110 = vxor.u32 %v2036, 2147483648
      %v2111 = vxor.u32 %v2105, 2147483648
      %v2112 = vxor.u32 %v2107, 2147483648
      %v2113 = vmul.f32 %v2109, 1.442695
      %v2114 = vpow.pop %v2113
      %v2115 = vmul.f32 %v2110, 1.442695
      %v2116 = vpow.pop %v2115
      %v2117 = vmul.f32 %v2111, 1.442695
      %v2118 = vpow.pop %v2117
      %v2119 = vmul.f32 %v2112, 1.442695
      %v2120 = vpow.pop %v2119
      %v2121 = vadd.f32 %v2114, 1.0
      %v2122 = vadd.f32 %v2116, 1.0
      %v2123 = vadd.f32 %v2118, 1.0
      %v2124 = vadd.f32 %v2120, 1.0
      %v2125 = vrcp.pop %v2121
      %v2126 = vmul.f32 1.0, %v2125
      %v2127 = vrcp.pop %v2122
      %v2128 = vmul.f32 1.0, %v2127
      %v2129 = vrcp.pop %v2123
      %v2130 = vmul.f32 1.0, %v2129
      %v2131 = vrcp.pop %v2124
      %v2132 = vmul.f32 1.0, %v2131
      %v2133 = vlaneseq
      %v2134 = vshrl.u32 %v2133, 7
      %v2135 = vsub.s32 0, %v2134
      %v2136 = vrot.slane %v2126, %v2135
      %v2137 = vlaneseq
      %v2138 = vshrl.u32 %v2137, 7
      %v2139 = vsub.s32 0, %v2138
      %v2140 = vrot.slane %v2128, %v2139
      %v2141 = vlaneseq
      %v2142 = vshrl.u32 %v2141, 7
      %v2143 = vsub.s32 0, %v2142
      %v2144 = vrot.slane %v2130, %v2143
      %v2145 = vlaneseq
      %v2146 = vshrl.u32 %v2145, 7
      %v2147 = vsub.s32 0, %v2146
      %v2148 = vrot.slane %v2132, %v2147
      %v2149 = vmul.f32 %v1665, %v2136
      %v2150 = vmul.f32 %v1666, %v2140
      %v2151 = vmul.f32 %v1667, %v2144
      %v2152 = vmul.f32 %v1668, %v2148
      %v2153 = vmul.f32 %v1669, %v2136
      %v2154 = vmul.f32 %v1670, %v2140
      %v2155 = vmul.f32 %v1671, %v2144
      %v2156 = vmul.f32 %v1672, %v2148
      %v2157 = vld [vmem:[%s10] sm:$0xff]
      %v2158 = vld [vmem:[%s10 + $0x8] sm:$0xff]
      %v2159 = vld [vmem:[%s10 + $0x10] sm:$0xff]
      %v2160 = vld [vmem:[%s10 + $0x18] sm:$0xff]
      %v2161 = vld [vmem:[%s10 + $0x20] sm:$0xff]
      %v2162 = vld [vmem:[%s10 + $0x28] sm:$0xff]
      %v2163 = vld [vmem:[%s10 + $0x30] sm:$0xff]
      %v2164 = vld [vmem:[%s10 + $0x38] sm:$0xff]
      %v2165 = vld [vmem:[%s10 + $0x40] sm:$0xff]
      %v2166 = vld [vmem:[%s10 + $0x48] sm:$0xff]
      %v2167 = vld [vmem:[%s10 + $0x50] sm:$0xff]
      %v2168 = vld [vmem:[%s10 + $0x58] sm:$0xff]
      %v2169 = vld [vmem:[%s10 + $0x60] sm:$0xff]
      %v2170 = vld [vmem:[%s10 + $0x68] sm:$0xff]
      %v2171 = vld [vmem:[%s10 + $0x70] sm:$0xff]
      %v2172 = vld [vmem:[%s10 + $0x78] sm:$0xff]
      %v2173 = vld [vmem:[%s10 + $0x80] sm:$0xff]
      %v2174 = vld [vmem:[%s10 + $0x88] sm:$0xff]
      %v2175 = vld [vmem:[%s10 + $0x90] sm:$0xff]
      %v2176 = vld [vmem:[%s10 + $0x98] sm:$0xff]
      %v2177 = vld [vmem:[%s10 + $0xa0] sm:$0xff]
      %v2178 = vld [vmem:[%s10 + $0xa8] sm:$0xff]
      %v2179 = vld [vmem:[%s10 + $0xb0] sm:$0xff]
      %v2180 = vld [vmem:[%s10 + $0xb8] sm:$0xff]
      %v2181 = vld [vmem:[%s10 + $0xc0] sm:$0xff]
      %v2182 = vld [vmem:[%s10 + $0xc8] sm:$0xff]
      %v2183 = vld [vmem:[%s10 + $0xd0] sm:$0xff]
      %v2184 = vld [vmem:[%s10 + $0xd8] sm:$0xff]
      %v2185 = vld [vmem:[%s10 + $0xe0] sm:$0xff]
      %v2186 = vld [vmem:[%s10 + $0xe8] sm:$0xff]
      %v2187 = vld [vmem:[%s10 + $0xf0] sm:$0xff]
      %v2188 = vld [vmem:[%s10 + $0xf8] sm:$0xff]
      %v2189 = vld [vmem:[%s10 + $0x100] sm:$0xff]
      %v2190 = vld [vmem:[%s10 + $0x108] sm:$0xff]
      %v2191 = vld [vmem:[%s10 + $0x110] sm:$0xff]
      %v2192 = vld [vmem:[%s10 + $0x118] sm:$0xff]
      %v2193 = vld [vmem:[%s10 + $0x120] sm:$0xff]
      %v2194 = vld [vmem:[%s10 + $0x128] sm:$0xff]
      %v2195 = vld [vmem:[%s10 + $0x130] sm:$0xff]
      %v2196 = vld [vmem:[%s10 + $0x138] sm:$0xff]
      %v2197 = vld [vmem:[%s10 + $0x140] sm:$0xff]
      %v2198 = vld [vmem:[%s10 + $0x148] sm:$0xff]
      %v2199 = vld [vmem:[%s10 + $0x150] sm:$0xff]
      %v2200 = vld [vmem:[%s10 + $0x158] sm:$0xff]
      %v2201 = vld [vmem:[%s10 + $0x160] sm:$0xff]
      %v2202 = vld [vmem:[%s10 + $0x168] sm:$0xff]
      %v2203 = vld [vmem:[%s10 + $0x170] sm:$0xff]
      %v2204 = vld [vmem:[%s10 + $0x178] sm:$0xff]
      %v2205 = vld [vmem:[%s10 + $0x180] sm:$0xff]
      %v2206 = vld [vmem:[%s10 + $0x188] sm:$0xff]
      %v2207 = vld [vmem:[%s10 + $0x190] sm:$0xff]
      %v2208 = vld [vmem:[%s10 + $0x198] sm:$0xff]
      %v2209 = vld [vmem:[%s10 + $0x1a0] sm:$0xff]
      %v2210 = vld [vmem:[%s10 + $0x1a8] sm:$0xff]
      %v2211 = vld [vmem:[%s10 + $0x1b0] sm:$0xff]
      %v2212 = vld [vmem:[%s10 + $0x1b8] sm:$0xff]
      %v2213 = vld [vmem:[%s10 + $0x1c0] sm:$0xff]
      %v2214 = vld [vmem:[%s10 + $0x1c8] sm:$0xff]
      %v2215 = vld [vmem:[%s10 + $0x1d0] sm:$0xff]
      %v2216 = vld [vmem:[%s10 + $0x1d8] sm:$0xff]
      %v2217 = vld [vmem:[%s10 + $0x1e0] sm:$0xff]
      %v2218 = vld [vmem:[%s10 + $0x1e8] sm:$0xff]
      %v2219 = vld [vmem:[%s10 + $0x1f0] sm:$0xff]
      %v2220 = vld [vmem:[%s10 + $0x1f8] sm:$0xff]
      %v2221 = vld [vmem:[%s11] sm:$0x1]
      %v2223 = vlaneseq
      %v2224 = vshrl.u32 %v2223, 7
      %v2225 = vsub.s32 0, %v2224
      %v2226 = vrot.slane %v2221, %v2225
      %2228 = vmatprep.subr.mxu0 0.0
      %2229 = vmatpush1.msra.mxu0 %v2172
      %2230 = vmatprep.subr.mxu0 0.0
      %2231 = vmatpush1.msra.mxu0 %v2171
      %2232 = vmatprep.subr.mxu0 0.0
      %2233 = vmatpush1.msra.mxu0 %v2170
      %2234 = vmatprep.subr.mxu0 0.0
      %2235 = vmatpush1.msra.mxu0 %v2169
      %2236 = vmatprep.subr.mxu0 0.0
      %2237 = vmatpush1.msra.mxu0 %v2168
      %2238 = vmatprep.subr.mxu0 0.0
      %2239 = vmatpush1.msra.mxu0 %v2167
      %2240 = vmatprep.subr.mxu0 0.0
      %2241 = vmatpush1.msra.mxu0 %v2166
      %2242 = vmatprep.subr.mxu0 0.0
      %2243 = vmatpush1.msra.mxu0 %v2165
      %2244 = vmatprep.subr.mxu0 0.0
      %2245 = vmatpush1.msra.mxu0 %v2164
      %2246 = vmatprep.subr.mxu0 0.0
      %2247 = vmatpush1.msra.mxu0 %v2163
      %2248 = vmatprep.subr.mxu0 0.0
      %2249 = vmatpush1.msra.mxu0 %v2162
      %2250 = vmatprep.subr.mxu0 0.0
      %2251 = vmatpush1.msra.mxu0 %v2161
      %2252 = vmatprep.subr.mxu0 0.0
      %2253 = vmatpush1.msra.mxu0 %v2160
      %2254 = vmatprep.subr.mxu0 0.0
      %2255 = vmatpush1.msra.mxu0 %v2159
      %2256 = vmatprep.subr.mxu0 0.0
      %2257 = vmatpush1.msra.mxu0 %v2158
      %2258 = vmatprep.subr.mxu0 0.0
      %2259 = vmatpush1.msra.mxu0 %v2157
      %2260 = vmatprep.subr.mxu0 0.0
      %2261 = vmatpush2.msra.mxu0 %v2188
      %2262 = vmatprep.subr.mxu0 0.0
      %2263 = vmatpush2.msra.mxu0 %v2187
      %2264 = vmatprep.subr.mxu0 0.0
      %2265 = vmatpush2.msra.mxu0 %v2186
      %2266 = vmatprep.subr.mxu0 0.0
      %2267 = vmatpush2.msra.mxu0 %v2185
      %2268 = vmatprep.subr.mxu0 0.0
      %2269 = vmatpush2.msra.mxu0 %v2184
      %2270 = vmatprep.subr.mxu0 0.0
      %2271 = vmatpush2.msra.mxu0 %v2183
      %2272 = vmatprep.subr.mxu0 0.0
      %2273 = vmatpush2.msra.mxu0 %v2182
      %2274 = vmatprep.subr.mxu0 0.0
      %2275 = vmatpush2.msra.mxu0 %v2181
      %2276 = vmatprep.subr.mxu0 0.0
      %2277 = vmatpush2.msra.mxu0 %v2180
      %2278 = vmatprep.subr.mxu0 0.0
      %2279 = vmatpush2.msra.mxu0 %v2179
      %2280 = vmatprep.subr.mxu0 0.0
      %2281 = vmatpush2.msra.mxu0 %v2178
      %2282 = vmatprep.subr.mxu0 0.0
      %2283 = vmatpush2.msra.mxu0 %v2177
      %2284 = vmatprep.subr.mxu0 0.0
      %2285 = vmatpush2.msra.mxu0 %v2176
      %2286 = vmatprep.subr.mxu0 0.0
      %2287 = vmatpush2.msra.mxu0 %v2175
      %2288 = vmatprep.subr.mxu0 0.0
      %2289 = vmatpush2.msra.mxu0 %v2174
      %2290 = vmatprep.subr.mxu0 0.0
      %2291 = vmatpush2.msra.mxu0 %v2173
      %2292 = vmatprep.mubr.f32.mxu0 %v2150
      %2293 = vmatmul.mubr.f32.gmra.mxu0 %v2149
      %v2294 = vpop.f32.mrf.mxu0
      %v2295 = vadd.f32 %v2226, %v2294
      %v2296 = vpop.f32.mrf.mxu0
      %2297 = vmatprep.mubr.f32.mxu0 %v2154
      %2298 = vmatmul.mubr.f32.gmra.mxu0 %v2153
      %v2299 = vpop.f32.mrf.mxu0
      %v2300 = vadd.f32 %v2226, %v2299
      %v2301 = vpop.f32.mrf.mxu0
      %2302 = vdwg.mxu0
      %2303 = vmatprep.subr.mxu0 0.0
      %2304 = vmatpush1.msra.mxu0 %v2204
      %2305 = vmatprep.subr.mxu0 0.0
      %2306 = vmatpush1.msra.mxu0 %v2203
      %2307 = vmatprep.subr.mxu0 0.0
      %2308 = vmatpush1.msra.mxu0 %v2202
      %2309 = vmatprep.subr.mxu0 0.0
      %2310 = vmatpush1.msra.mxu0 %v2201
      %2311 = vmatprep.subr.mxu0 0.0
      %2312 = vmatpush1.msra.mxu0 %v2200
      %2313 = vmatprep.subr.mxu0 0.0
      %2314 = vmatpush1.msra.mxu0 %v2199
      %2315 = vmatprep.subr.mxu0 0.0
      %2316 = vmatpush1.msra.mxu0 %v2198
      %2317 = vmatprep.subr.mxu0 0.0
      %2318 = vmatpush1.msra.mxu0 %v2197
      %2319 = vmatprep.subr.mxu0 0.0
      %2320 = vmatpush1.msra.mxu0 %v2196
      %2321 = vmatprep.subr.mxu0 0.0
      %2322 = vmatpush1.msra.mxu0 %v2195
      %2323 = vmatprep.subr.mxu0 0.0
      %2324 = vmatpush1.msra.mxu0 %v2194
      %2325 = vmatprep.subr.mxu0 0.0
      %2326 = vmatpush1.msra.mxu0 %v2193
      %2327 = vmatprep.subr.mxu0 0.0
      %2328 = vmatpush1.msra.mxu0 %v2192
      %2329 = vmatprep.subr.mxu0 0.0
      %2330 = vmatpush1.msra.mxu0 %v2191
      %2331 = vmatprep.subr.mxu0 0.0
      %2332 = vmatpush1.msra.mxu0 %v2190
      %2333 = vmatprep.subr.mxu0 0.0
      %2334 = vmatpush1.msra.mxu0 %v2189
      %2335 = vmatprep.subr.mxu0 0.0
      %2336 = vmatpush2.msra.mxu0 %v2220
      %2337 = vmatprep.subr.mxu0 0.0
      %2338 = vmatpush2.msra.mxu0 %v2219
      %2339 = vmatprep.subr.mxu0 0.0
      %2340 = vmatpush2.msra.mxu0 %v2218
      %2341 = vmatprep.subr.mxu0 0.0
      %2342 = vmatpush2.msra.mxu0 %v2217
      %2343 = vmatprep.subr.mxu0 0.0
      %2344 = vmatpush2.msra.mxu0 %v2216
      %2345 = vmatprep.subr.mxu0 0.0
      %2346 = vmatpush2.msra.mxu0 %v2215
      %2347 = vmatprep.subr.mxu0 0.0
      %2348 = vmatpush2.msra.mxu0 %v2214
      %2349 = vmatprep.subr.mxu0 0.0
      %2350 = vmatpush2.msra.mxu0 %v2213
      %2351 = vmatprep.subr.mxu0 0.0
      %2352 = vmatpush2.msra.mxu0 %v2212
      %2353 = vmatprep.subr.mxu0 0.0
      %2354 = vmatpush2.msra.mxu0 %v2211
      %2355 = vmatprep.subr.mxu0 0.0
      %2356 = vmatpush2.msra.mxu0 %v2210
      %2357 = vmatprep.subr.mxu0 0.0
      %2358 = vmatpush2.msra.mxu0 %v2209
      %2359 = vmatprep.subr.mxu0 0.0
      %2360 = vmatpush2.msra.mxu0 %v2208
      %2361 = vmatprep.subr.mxu0 0.0
      %2362 = vmatpush2.msra.mxu0 %v2207
      %2363 = vmatprep.subr.mxu0 0.0
      %2364 = vmatpush2.msra.mxu0 %v2206
      %2365 = vmatprep.subr.mxu0 0.0
      %2366 = vmatpush2.msra.mxu0 %v2205
      %2367 = vmatprep.mubr.f32.mxu0 %v2152
      %2368 = vmatmul.mubr.f32.gmra.mxu0 %v2151
      %v2369 = vpop.f32.mrf.mxu0
      %v2370 = vadd.f32 %v2295, %v2369
      %v2371 = vpop.f32.mrf.mxu0
      %2372 = vmatprep.mubr.f32.mxu0 %v2156
      %2373 = vmatmul.mubr.f32.gmra.mxu0 %v2155
      %v2374 = vpop.f32.mrf.mxu0
      %v2375 = vadd.f32 %v2300, %v2374
      %v2376 = vpop.f32.mrf.mxu0
      %2377 = vdwg.mxu0
      %v2378 = vadd.f32 %v2370, %v414
      %v2379 = vadd.f32 %v2375, %v415
      %2380 = vst [vmem:[%s413] sm:$0xff] %v2378
      %2381 = vst [vmem:[%s413 + $0x8] sm:$0xff] %v2379
      %p2382 = scmp.lt.s32.totalorder %s23, 1
      %s2383 = scalar_select %p2382, %s23, 1
      %s2384 = smul.addr %s2383, 2
      %s2385 = smul.addr %s2384, 8
      %s2386 = scalar_lea.vmem %s12, %s2385
      // Predicated region
      $region69: #{mbconv_block_bw.1} parent=67 // pred_check
        %p2387 = pneg %p298
      $region70: #{mbconv_block_bw.1} parent=67 // pred_check_branch
        %2389 = sbr.rel (%p2387) target = $region72
      $region71: #{mbconv_block_bw.1} parent=67 // pred_region
        _
      $region72: #{mbconv_block_bw.1} parent=67 // pred_fallthru
        _
    $region68: #{mbconv_block_bw.1} parent=5 // pred_fallthru
      _
    %p2390 = scmp.le.s32.totalorder 2, %s18
    // Predicated region
    $region73: #{mbconv_block_bw.1} parent=5 // pred_check
      %p2391 = pneg %p2390
    $region74: #{mbconv_block_bw.1} parent=5 // pred_check_branch
      %2393 = sbr.rel (%p2391) target = $region76
    $region75: #{mbconv_block_bw.1} parent=5 // pred_region
      %s2394 = ssub.s32 %s18, 2
      // Predicated region
      $region77: #{mbconv_block_bw.1} parent=75 // pred_check
        %p2395 = pneg %p304
      $region78: #{mbconv_block_bw.1} parent=75 // pred_check_branch
        %2397 = sbr.rel (%p2395) target = $region80
      $region79: #{mbconv_block_bw.1} parent=75 // pred_region
        %p2398 = scmp.lt.s32.totalorder %s24, 1
        %s2399 = scalar_select %p2398, %s24, 1
        %s2400 = smul.addr %s2399, 2
        %s2401 = smul.addr %s2400, 8
        %s2402 = scalar_lea.vmem %s12, %s2401
      $region80: #{mbconv_block_bw.1} parent=75 // pred_fallthru
        _
    $region76: #{mbconv_block_bw.1} parent=5 // pred_fallthru
      _
  $region6: #{mbconv_block_bw.1} parent=0 // loop_footer
    %s22 = sadd.s32 1, %s18
  $region7: #{mbconv_block_bw.1} parent=0 // loop_footer_branch
    %17 = sbr.rel target = $region3
  $region8: #{mbconv_block_bw.1} parent=0 // loop_exit
    _

</llo_original>
